<compile_context>
chip_gen: v6e
topology: v6e:2x2x1
jax: 0.10.0
libtpu: 0.0.40
codegen_flags: <defaults>
</compile_context>

<pallas_src>
import functools

import numpy as np

import jax
import jax.numpy as jnp
from jax import lax
from jax.experimental import pallas as pl
from jax.experimental.pallas import tpu as pltpu


@functools.lru_cache(maxsize=None)
def _bilinear_matrix(src_size: int, dst_size: int) -> np.ndarray:
    """Row-stochastic (dst_size, src_size) matrix reproducing PyTorch's
    F.interpolate(mode='bilinear', align_corners=False) along one axis."""
    i = np.arange(dst_size, dtype=np.float64)
    scale = src_size / dst_size
    src = np.clip((i + 0.5) * scale - 0.5, 0.0, None)   # negative clamp like torch
    x0 = np.floor(src)
    lam = src - x0
    x0i = np.minimum(x0.astype(np.int64), src_size - 1)
    x1i = np.minimum(x0i + 1, src_size - 1)
    a = np.zeros((dst_size, src_size), dtype=np.float32)
    rows = np.arange(dst_size)
    np.add.at(a, (rows, x0i), (1.0 - lam).astype(np.float32))
    np.add.at(a, (rows, x1i), lam.astype(np.float32))
    return a


# ----------------------------- kernel 1: 1x1 conv -----------------------------

def _conv1x1_kernel(x_ref, w_ref, b_ref, o_ref):
    # x_ref: (1, Nb, D)  token block in native hidden_states layout
    # w_ref: (C, D)      conv weight
    # b_ref: (C, 1)      conv bias (f32)
    # o_ref: (1, C, Nb)  channels-first block (lane-dense along tokens)
    #
    # 'cd,nd->cn' (contract D, the last dim of both operands): emits (C, Nb)
    # directly on the MXU with f32 accumulation -- no XLU transpose and no
    # lane-sparse (N, C) intermediate.
    feat = lax.dot_general(
        w_ref[...], x_ref[0],
        dimension_numbers=(((1,), (1,)), ((), ())),
        preferred_element_type=jnp.float32)              # (C, Nb)
    feat = feat + b_ref[...]                             # bias broadcast along lanes
    o_ref[0] = feat.astype(o_ref.dtype)


# ----------------------- kernel 2: separable upsample ------------------------

def _upsample_kernel(f_ref, awt_ref, ah_ref, o_ref, *, cb, h):
    # f_ref  : (1, Cb*H, W)    conv features, Cb channels stacked along rows
    # awt_ref: (W, S)          A_w^T (width upsample), f32
    # ah_ref : (Rb, H)         A_h row tile (height upsample), f32
    # o_ref  : (1, Cb, Rb, S)  output row tile for this channel block
    f = f_ref[0].astype(jnp.float32)                     # tiny block, cheap cast
    # Width pass, stacked over the whole channel block: one (Cb*H, W) @ (W, S)
    # MXU matmul (M ~= 128 rows instead of H).
    r1 = jnp.dot(f, awt_ref[...], preferred_element_type=jnp.float32)
    ah = ah_ref[...]                                     # (Rb, H)
    for c in range(cb):                                  # bounded unroll (cb <= 16)
        # Height pass: (Rb, H) @ (H, S) -> (Rb, S); unmasked 256-wide store.
        oc = jnp.dot(ah, r1[c * h:(c + 1) * h, :],
                     preferred_element_type=jnp.float32)
        o_ref[0, c] = oc.astype(o_ref.dtype)


# -------------------------------- tiling picks --------------------------------

def _pick_channel_block(num_classes: int, h: int) -> int:
    # The stacked feature block is (cb*H, W): its second-minor dim cb*H must be
    # a multiple of 8 (sublane tiling) unless it covers all channels.
    if num_classes <= 16 and (num_classes * h) % 8 == 0:
        return num_classes              # one/few blocks, no channel padding
    return 8                            # 8*H is always sublane aligned


def _pick_token_block(n: int) -> int:
    # Token block for the conv kernel: it is the lane (minor) dim of the
    # (1, C, Nb) output block, so it must be a multiple of 128 (or all of N).
    # Prefer >= 2 blocks per batch element so v7x's 2 TensorCores stay busy.
    half = n // 2
    if n % 2 == 0 and half % 128 == 0:
        return half
    return n


# --------------------------------- forward -----------------------------------

@functools.partial(
    jax.jit,
    static_argnames=("num_classes", "out_size", "compute_dtype", "out_dtype",
                     "cb", "row_block", "n_block"))
def _forward(x, weight, bias, a_h, a_w, *, num_classes, out_size,
             compute_dtype, out_dtype, cb, row_block, n_block):
    B, N, D = x.shape
    C_pad = weight.shape[0]                 # padded to a multiple of cb
    H = W = int(round(N ** 0.5))
    S = out_size

    xc = x.astype(compute_dtype)
    wc = weight.astype(compute_dtype)                   # (C_pad, D)
    b2 = bias.reshape(C_pad, 1).astype(jnp.float32)     # (C_pad, 1)
    awt = a_w.T.astype(jnp.float32)                     # (W, S)  keep f32: rows sum to 1
    ah = a_h.astype(jnp.float32)                        # (S, H)

    # --- kernel 1: 1x1 conv (token matmul) -> (B, C_pad, N), compute_dtype ---
    feat = pl.pallas_call(
        _conv1x1_kernel,
        out_shape=jax.ShapeDtypeStruct((B, C_pad, N), compute_dtype),
        grid=(B, N // n_block),
        in_specs=[
            pl.BlockSpec((1, n_block, D), lambda b, n: (b, n, 0)),
            pl.BlockSpec((C_pad, D), lambda b, n: (0, 0)),
            pl.BlockSpec((C_pad, 1), lambda b, n: (0, 0)),
        ],
        out_specs=pl.BlockSpec((1, C_pad, n_block), lambda b, n: (b, 0, n)),
        compiler_params=pltpu.CompilerParams(
            dimension_semantics=("parallel", "parallel")),
    )(xc, wc, b2)

    # free metadata reshape (no data movement): (B, C_pad, N) -> (B, C_pad*H, W)
    feat_rows = feat.reshape(B, C_pad * H, W)

    # --- kernel 2: separable bilinear upsample -> (B, C, S, S) ---
    # Grid tiles (batch, channel block, output row tile).  The last channel
    # block may stick out past num_classes; those writes are masked by Pallas.
    num_row_tiles = S // row_block
    out = pl.pallas_call(
        functools.partial(_upsample_kernel, cb=cb, h=H),
        out_shape=jax.ShapeDtypeStruct((B, num_classes, S, S), out_dtype),
        grid=(B, C_pad // cb, num_row_tiles),
        in_specs=[
            pl.BlockSpec((1, cb * H, W), lambda b, c, r: (b, c, 0)),
            pl.BlockSpec((W, S), lambda b, c, r: (0, 0)),
            pl.BlockSpec((row_block, H), lambda b, c, r: (r, 0)),
        ],
        out_specs=pl.BlockSpec((1, cb, row_block, S),
                               lambda b, c, r: (b, c, r, 0)),
        compiler_params=pltpu.CompilerParams(
            dimension_semantics=("parallel", "parallel", "parallel")),
    )(feat_rows, awt, ah)
    return out


def segmentation_head(hidden_states, weight, bias, *, out_size=256,
                      compute_dtype=jnp.bfloat16, out_dtype=None):
    """Forward pass of SegmentationHead.

    hidden_states: (B, N, D); weight: (C, D) or (C, D, 1, 1); bias: (C,).
    Returns (B, C, out_size, out_size) in `out_dtype` (default: input dtype;
    pass jnp.bfloat16 to halve the dominant HBM store traffic).
    """
    B, N, D = hidden_states.shape
    H = W = int(round(N ** 0.5))
    assert H * W == N, "N must be a perfect square"
    C = weight.shape[0]
    weight2d = weight.reshape(C, -1)
    if out_dtype is None:
        out_dtype = hidden_states.dtype

    cb = _pick_channel_block(C, H)
    C_pad = ((C + cb - 1) // cb) * cb
    if C_pad != C:
        # Pad the (tiny) conv params so the conv output holds a whole number of
        # channel blocks; the padded output channels are never written.
        weight2d = jnp.pad(weight2d, ((0, C_pad - C), (0, 0)))
        bias = jnp.pad(bias, (0, C_pad - C))

    a_h = jnp.asarray(_bilinear_matrix(H, out_size))    # (out_size, H)
    a_w = jnp.asarray(_bilinear_matrix(W, out_size))    # (out_size, W)

    row_block = 128 if out_size % 128 == 0 else out_size
    n_block = _pick_token_block(N)
    return _forward(hidden_states, weight2d, bias, a_h, a_w,
                    num_classes=C, out_size=out_size,
                    compute_dtype=compute_dtype, out_dtype=out_dtype,
                    cb=cb, row_block=row_block, n_block=n_block)


# -------------------------------- reference -----------------------------------

def _reference(hidden_states, weight, bias, out_size=256):
    """Pure-JAX f32 reference using the same bilinear weight construction."""
    B, N, D = hidden_states.shape
    H = W = int(round(N ** 0.5))
    C = weight.shape[0]
    w2 = weight.reshape(C, -1)
    feat = jnp.einsum("bnd,cd->bcn", hidden_states, w2) + bias[None, :, None]
    img = feat.reshape(B, C, H, W)
    a_h = jnp.asarray(_bilinear_matrix(H, out_size))
    a_w = jnp.asarray(_bilinear_matrix(W, out_size))
    tmp = jnp.einsum("oh,bchw->bcow", a_h, img)
    return jnp.einsum("pw,bcow->bcop", a_w, tmp)


if __name__ == "__main__":
    # small shapes: B=2, N=16 (H=W=4), embed_dim=32, num_classes=4
    B, N, D, C = 2, 16, 32, 4
    key = jax.random.PRNGKey(0)
    k1, k2, k3 = jax.random.split(key, 3)

    hidden_states = jax.random.normal(k1, (B, N, D), dtype=jnp.float32)
    # Conv2d(D, C, kernel_size=1): weight (C, D, 1, 1) -> stored as (C, D)
    conv_weight = jax.random.normal(k2, (C, D), dtype=jnp.float32) * 0.1
    conv_bias = jax.random.normal(k3, (C,), dtype=jnp.float32) * 0.1

    ref = _reference(hidden_states, conv_weight, conv_bias)

    # f32 compute path: tight check against the reference.
    out_f32 = segmentation_head(hidden_states, conv_weight, conv_bias,
                                compute_dtype=jnp.float32)
    out_f32 = jax.block_until_ready(out_f32)
    assert out_f32.shape == (B, C, 256, 256), out_f32.shape
    assert jnp.allclose(out_f32, ref, atol=1e-4, rtol=1e-4)

    # default path: bf16 MXU conv (f32 accumulation), f32 output, f32 interp.
    out_def = segmentation_head(hidden_states, conv_weight, conv_bias)
    out_def = jax.block_until_ready(out_def)
    assert out_def.shape == (B, C, 256, 256), out_def.shape
    assert jnp.allclose(out_def, ref, atol=5e-2, rtol=5e-2)

    # bf16-output path (halves the dominant HBM store traffic).
    out_bf16 = segmentation_head(hidden_states, conv_weight, conv_bias,
                                 out_dtype=jnp.bfloat16)
    out_bf16 = jax.block_until_ready(out_bf16)
    assert out_bf16.shape == (B, C, 256, 256), out_bf16.shape
    assert out_bf16.dtype == jnp.bfloat16
    assert jnp.allclose(out_bf16.astype(jnp.float32), ref, atol=1e-1, rtol=1e-1)

    print("KERNEL_OK")
</pallas_src>

<mosaic_0001>
module attributes {stable_mosaic.version = 11 : i64} {
  func.func @_upsample_kernel(%arg0: i32, %arg1: i32, %arg2: i32, %arg3: memref<1x16x4xf32, #tpu.memory_space<vmem>>, %arg4: memref<4x256xf32, #tpu.memory_space<vmem>>, %arg5: memref<128x4xf32, #tpu.memory_space<vmem>>, %arg6: memref<1x4x128x256xf32, #tpu.memory_space<vmem>>) attributes {dimension_semantics = [#tpu.dimension_semantics<parallel>, #tpu.dimension_semantics<parallel>, #tpu.dimension_semantics<parallel>], iteration_bounds = array<i64: 2, 1, 2>, scalar_prefetch = 0 : i64, scratch_operands = 0 : i64, tpu.core_type = #tpu.core_type<tc>, window_params = [{transform_indices = @transform_0, window_bounds = array<i64: 1, 16, 4>}, {pipeline_mode = #tpu.pipeline_mode<synchronous>, transform_indices = @transform_1, window_bounds = array<i64: 4, 256>}, {transform_indices = @transform_2, window_bounds = array<i64: 128, 4>}, {transform_indices = @transform_3, window_bounds = array<i64: 1, 4, 128, 256>}]} {
    %c0 = arith.constant 0 : index
    %c0_0 = arith.constant 0 : index
    %c0_1 = arith.constant 0 : index
    %0 = vector.load %arg3[%c0, %c0_0, %c0_1] : memref<1x16x4xf32, #tpu.memory_space<vmem>>, vector<1x16x4xf32>
    %1 = vector.shape_cast %0 : vector<1x16x4xf32> to vector<16x4xf32>
    %c0_2 = arith.constant 0 : index
    %c0_3 = arith.constant 0 : index
    %2 = vector.load %arg4[%c0_2, %c0_3] : memref<4x256xf32, #tpu.memory_space<vmem>>, vector<4x256xf32>
    %cst = arith.constant dense<0.000000e+00> : vector<16x256xf32>
    %3 = tpu.matmul %1, %2, %cst {dimension_numbers = #tpu.dot_dimension_numbers<[1], [0], [0], [1], [0, 0, 1, 1], [], []>} : vector<16x4xf32>, vector<4x256xf32>, vector<16x256xf32> -> vector<16x256xf32>
    %c0_4 = arith.constant 0 : index
    %c0_5 = arith.constant 0 : index
    %4 = vector.load %arg5[%c0_4, %c0_5] : memref<128x4xf32, #tpu.memory_space<vmem>>, vector<128x4xf32>
    %5 = vector.extract_strided_slice %3 {offsets = [0, 0], sizes = [4, 256], strides = [1, 1]} : vector<16x256xf32> to vector<4x256xf32>
    %cst_6 = arith.constant dense<0.000000e+00> : vector<128x256xf32>
    %6 = tpu.matmul %4, %5, %cst_6 {dimension_numbers = #tpu.dot_dimension_numbers<[1], [0], [0], [1], [0, 0, 1, 1], [], []>} : vector<128x4xf32>, vector<4x256xf32>, vector<128x256xf32> -> vector<128x256xf32>
    %c0_7 = arith.constant 0 : index
    %c0_8 = arith.constant 0 : index
    %c0_9 = arith.constant 0 : index
    %c0_10 = arith.constant 0 : index
    %7 = vector.load %arg6[%c0_7, %c0_8, %c0_9, %c0_10] : memref<1x4x128x256xf32, #tpu.memory_space<vmem>>, vector<1x1x128x256xf32>
    %8 = vector.shape_cast %7 : vector<1x1x128x256xf32> to vector<128x256xf32>
    %9 = vector.shape_cast %6 : vector<128x256xf32> to vector<1x1x128x256xf32>
    tpu.vector_store %arg6[%c0_7, %c0_8, %c0_9, %c0_10], %9 {strides = array<i32>} : memref<1x4x128x256xf32, #tpu.memory_space<vmem>>, vector<1x1x128x256xf32>,
    %10 = vector.extract_strided_slice %3 {offsets = [4, 0], sizes = [4, 256], strides = [1, 1]} : vector<16x256xf32> to vector<4x256xf32>
    %cst_11 = arith.constant dense<0.000000e+00> : vector<128x256xf32>
    %11 = tpu.matmul %4, %10, %cst_11 {dimension_numbers = #tpu.dot_dimension_numbers<[1], [0], [0], [1], [0, 0, 1, 1], [], []>} : vector<128x4xf32>, vector<4x256xf32>, vector<128x256xf32> -> vector<128x256xf32>
    %c0_12 = arith.constant 0 : index
    %c1 = arith.constant 1 : index
    %c0_13 = arith.constant 0 : index
    %c0_14 = arith.constant 0 : index
    %12 = vector.load %arg6[%c0_12, %c1, %c0_13, %c0_14] : memref<1x4x128x256xf32, #tpu.memory_space<vmem>>, vector<1x1x128x256xf32>
    %13 = vector.shape_cast %12 : vector<1x1x128x256xf32> to vector<128x256xf32>
    %14 = vector.shape_cast %11 : vector<128x256xf32> to vector<1x1x128x256xf32>
    tpu.vector_store %arg6[%c0_12, %c1, %c0_13, %c0_14], %14 {strides = array<i32>} : memref<1x4x128x256xf32, #tpu.memory_space<vmem>>, vector<1x1x128x256xf32>,
    %15 = vector.extract_strided_slice %3 {offsets = [8, 0], sizes = [4, 256], strides = [1, 1]} : vector<16x256xf32> to vector<4x256xf32>
    %cst_15 = arith.constant dense<0.000000e+00> : vector<128x256xf32>
    %16 = tpu.matmul %4, %15, %cst_15 {dimension_numbers = #tpu.dot_dimension_numbers<[1], [0], [0], [1], [0, 0, 1, 1], [], []>} : vector<128x4xf32>, vector<4x256xf32>, vector<128x256xf32> -> vector<128x256xf32>
    %c0_16 = arith.constant 0 : index
    %c2 = arith.constant 2 : index
    %c0_17 = arith.constant 0 : index
    %c0_18 = arith.constant 0 : index
    %17 = vector.load %arg6[%c0_16, %c2, %c0_17, %c0_18] : memref<1x4x128x256xf32, #tpu.memory_space<vmem>>, vector<1x1x128x256xf32>
    %18 = vector.shape_cast %17 : vector<1x1x128x256xf32> to vector<128x256xf32>
    %19 = vector.shape_cast %16 : vector<128x256xf32> to vector<1x1x128x256xf32>
    tpu.vector_store %arg6[%c0_16, %c2, %c0_17, %c0_18], %19 {strides = array<i32>} : memref<1x4x128x256xf32, #tpu.memory_space<vmem>>, vector<1x1x128x256xf32>,
    %20 = vector.extract_strided_slice %3 {offsets = [12, 0], sizes = [4, 256], strides = [1, 1]} : vector<16x256xf32> to vector<4x256xf32>
    %cst_19 = arith.constant dense<0.000000e+00> : vector<128x256xf32>
    %21 = tpu.matmul %4, %20, %cst_19 {dimension_numbers = #tpu.dot_dimension_numbers<[1], [0], [0], [1], [0, 0, 1, 1], [], []>} : vector<128x4xf32>, vector<4x256xf32>, vector<128x256xf32> -> vector<128x256xf32>
    %c0_20 = arith.constant 0 : index
    %c3 = arith.constant 3 : index
    %c0_21 = arith.constant 0 : index
    %c0_22 = arith.constant 0 : index
    %22 = vector.load %arg6[%c0_20, %c3, %c0_21, %c0_22] : memref<1x4x128x256xf32, #tpu.memory_space<vmem>>, vector<1x1x128x256xf32>
    %23 = vector.shape_cast %22 : vector<1x1x128x256xf32> to vector<128x256xf32>
    %24 = vector.shape_cast %21 : vector<128x256xf32> to vector<1x1x128x256xf32>
    tpu.vector_store %arg6[%c0_20, %c3, %c0_21, %c0_22], %24 {strides = array<i32>} : memref<1x4x128x256xf32, #tpu.memory_space<vmem>>, vector<1x1x128x256xf32>,
    return
  }
  func.func @transform_0(%arg0: i32, %arg1: i32, %arg2: i32) -> (i32, i32, i32) {
    %c0_i32 = arith.constant 0 : i32
    %c0_i32_0 = arith.constant 0 : i32
    return %arg0, %arg1, %c0_i32 : i32, i32, i32
  }
  func.func @transform_1(%arg0: i32, %arg1: i32, %arg2: i32) -> (i32, i32) {
    %c0_i32 = arith.constant 0 : i32
    %c0_i32_0 = arith.constant 0 : i32
    %c0_i32_1 = arith.constant 0 : i32
    return %c0_i32, %c0_i32_0 : i32, i32
  }
  func.func @transform_2(%arg0: i32, %arg1: i32, %arg2: i32) -> (i32, i32) {
    %c0_i32 = arith.constant 0 : i32
    %c0_i32_0 = arith.constant 0 : i32
    return %arg2, %c0_i32 : i32, i32
  }
  func.func @transform_3(%arg0: i32, %arg1: i32, %arg2: i32) -> (i32, i32, i32, i32) {
    %c0_i32 = arith.constant 0 : i32
    %c0_i32_0 = arith.constant 0 : i32
    return %arg0, %arg1, %arg2, %c0_i32 : i32, i32, i32, i32
  }
}

module attributes {stable_mosaic.version = 11 : i64} {
  func.func @_conv1x1_kernel(%arg0: i32, %arg1: i32, %arg2: memref<1x16x32xf32, #tpu.memory_space<vmem>>, %arg3: memref<4x32xf32, #tpu.memory_space<vmem>>, %arg4: memref<4x1xf32, #tpu.memory_space<vmem>>, %arg5: memref<1x4x16xf32, #tpu.memory_space<vmem>>) attributes {dimension_semantics = [#tpu.dimension_semantics<parallel>, #tpu.dimension_semantics<parallel>], iteration_bounds = array<i64: 2, 1>, scalar_prefetch = 0 : i64, scratch_operands = 0 : i64, tpu.core_type = #tpu.core_type<tc>, window_params = [{transform_indices = @transform_0, window_bounds = array<i64: 1, 16, 32>}, {pipeline_mode = #tpu.pipeline_mode<synchronous>, transform_indices = @transform_1, window_bounds = array<i64: 4, 32>}, {pipeline_mode = #tpu.pipeline_mode<synchronous>, transform_indices = @transform_2, window_bounds = array<i64: 4, 1>}, {transform_indices = @transform_3, window_bounds = array<i64: 1, 4, 16>}]} {
    %c0 = arith.constant 0 : index
    %c0_0 = arith.constant 0 : index
    %0 = vector.load %arg3[%c0, %c0_0] : memref<4x32xf32, #tpu.memory_space<vmem>>, vector<4x32xf32>
    %c0_1 = arith.constant 0 : index
    %c0_2 = arith.constant 0 : index
    %c0_3 = arith.constant 0 : index
    %1 = vector.load %arg2[%c0_1, %c0_2, %c0_3] : memref<1x16x32xf32, #tpu.memory_space<vmem>>, vector<1x16x32xf32>
    %2 = vector.shape_cast %1 : vector<1x16x32xf32> to vector<16x32xf32>
    %cst = arith.constant dense<0.000000e+00> : vector<4x16xf32>
    %3 = tpu.matmul %0, %2, %cst {dimension_numbers = #tpu.dot_dimension_numbers<[1], [1], [0], [0], [0, 0, 1, 0], [], []>} : vector<4x32xf32>, vector<16x32xf32>, vector<4x16xf32> -> vector<4x16xf32>
    %c0_4 = arith.constant 0 : index
    %c0_5 = arith.constant 0 : index
    %4 = vector.load %arg4[%c0_4, %c0_5] : memref<4x1xf32, #tpu.memory_space<vmem>>, vector<4x1xf32>
    %5 = vector.broadcast %4 : vector<4x1xf32> to vector<4x16xf32>
    %6 = arith.addf %3, %5 : vector<4x16xf32>
    %c0_6 = arith.constant 0 : index
    %c0_7 = arith.constant 0 : index
    %c0_8 = arith.constant 0 : index
    %7 = vector.load %arg5[%c0_6, %c0_7, %c0_8] : memref<1x4x16xf32, #tpu.memory_space<vmem>>, vector<1x4x16xf32>
    %8 = vector.shape_cast %7 : vector<1x4x16xf32> to vector<4x16xf32>
    %9 = vector.shape_cast %6 : vector<4x16xf32> to vector<1x4x16xf32>
    tpu.vector_store %arg5[%c0_6, %c0_7, %c0_8], %9 {strides = array<i32>} : memref<1x4x16xf32, #tpu.memory_space<vmem>>, vector<1x4x16xf32>,
    return
  }
  func.func @transform_0(%arg0: i32, %arg1: i32) -> (i32, i32, i32) {
    %c0_i32 = arith.constant 0 : i32
    %c0_i32_0 = arith.constant 0 : i32
    return %arg0, %arg1, %c0_i32 : i32, i32, i32
  }
  func.func @transform_1(%arg0: i32, %arg1: i32) -> (i32, i32) {
    %c0_i32 = arith.constant 0 : i32
    %c0_i32_0 = arith.constant 0 : i32
    %c0_i32_1 = arith.constant 0 : i32
    return %c0_i32, %c0_i32_0 : i32, i32
  }
  func.func @transform_2(%arg0: i32, %arg1: i32) -> (i32, i32) {
    %c0_i32 = arith.constant 0 : i32
    %c0_i32_0 = arith.constant 0 : i32
    %c0_i32_1 = arith.constant 0 : i32
    return %c0_i32, %c0_i32_0 : i32, i32
  }
  func.func @transform_3(%arg0: i32, %arg1: i32) -> (i32, i32, i32) {
    %c0_i32 = arith.constant 0 : i32
    %c0_i32_0 = arith.constant 0 : i32
    return %arg0, %c0_i32, %arg1 : i32, i32, i32
  }
}

</mosaic_0001>

<llo_original>
// kernel: _forward.2
$region0: #{_forward.2}
  #allocation0 [shape = 'u32[]', space=smem, size = 0x4, offset = 0x4, fixed_abs, tag = 'smem constant byte address 0x4 - core index']
  #allocation1 [shape = 'u32[144,128]{1,0:T(1,128)}', space=vmem, size = 0x12000, scoped, tag = 'internal scratch']
  %s0 = inlined_call_operand.hbm [shape: f32[2,16,32], index: 0, kind: input, shape index: {}]
  %s1 = inlined_call_operand.hbm [shape: f32[4,32], index: 1, kind: input, shape index: {}]
  %s2 = inlined_call_operand.vmem [shape: f32[4,1], index: 2, kind: input, shape index: {}]
  %s3 = inlined_call_operand.vmem [shape: f32[2,4,16], index: 3, kind: output, shape index: {}]
  %s4 = sld [smem:[#allocation0]]
  $region53: #{_forward.2} parent=0
    _
  %s6 = ssub.s32 1, %s4
  %s7 = scalar_select 0, %s6, %s4
  $region1: #{_forward.2} parent=0
    #allocation2 [shape = 'u8[16384]{0}', space=vmem, size = 0x4000, scoped, tag = 'input window, operand 0']
    #allocation3 [shape = 's32[2]{0}', space=sflag, size = 0x8, scoped, tag = 'scoped memory for _forward.2']
    #allocation4 [shape = 'u8[2048]{0}', space=vmem, size = 0x800, scoped, tag = 'input window, operand 1, single buffered']
    #allocation5 [shape = 's32[1]{0}', space=sflag, size = 0x4, scoped, tag = 'scoped memory for _forward.2']
    %8 = vsyncpa [#allocation3], 0
    %s9 = scalar_lea.sflag [#allocation3], 1
    %10 = vsyncpa %s9, 0
    %11 = vsyncpa [#allocation5], 0
    loop: start=0, step=1, limit=4
    $region2: #{_forward.2} parent=1 // loop_pre_header
      _
    $region3: #{_forward.2} parent=1 // loop_header
      %s13 = sphi 0, %s17
      %p14 = scmp.ge.s32.totalorder %s13, 4
      %s20 = sphi 0, %s32
      %s21 = sphi 0, %s28
      %s22 = sphi 0, %s20
      %s23 = sphi 0, %s21
      %s24 = sphi 0, %s22
      %s25 = sphi 0, %s23
      %s37 = sphi 0, %s39
      %s40 = sphi 0, %s37
      %s41 = sphi 0, %s40
      %s57 = sphi 0, %s41
      %s61 = sphi 0, %s61
      %s63 = sphi 0, %s61
      %s64 = sphi 0, %s63
      %s78 = sphi 0, %s64
      %s82 = sphi 0, %s82
      %s84 = sphi 0, %s82
      %s85 = sphi 0, %s84
      %s99 = sphi 0, %s85
      %s107 = sphi 0, %s109
      %s110 = sphi 0, %s107
      %s111 = sphi 0, %s110
      %s127 = sphi 0, %s111
    $region4: #{_forward.2} parent=1 // loop_header_branch
      %16 = sbr.rel (%p14) target = $region8
    $region5: #{_forward.2} parent=1 // loop_body
      %s18 = ssub.s32 %s13, 1
      %s19 = ssub.s32 %s13, 2
      %s26 = sadd.s32 1, %s21
      %p27 = scmp.ge.s32.totalorder %s26, 1
      %s28 = scalar_select %p27, 0, %s26
      %s29 = sadd.s32 1, %s20
      %s30 = scalar_select %p27, %s29, %s20
      %p31 = scmp.ge.s32.totalorder %s30, 2
      %s32 = scalar_select %p31, 0, %s30
      %s33 = ssub.s32 %s20, %s32
      %s34 = ssub.s32 %s21, %s28
      %s35 = sor.u32 %s33, %s34
      %p36 = scmp.eq.s32.totalorder %s35, 0
      %s38 = sadd.s32 %s37, 1
      %s39 = scalar_select %p36, %s37, %s38
      %p42 = pneg %p36
      %p43 = scmp.eq.s32.totalorder %s13, 1
      %p44 = por %p42, %p43
      %p45 = scmp.ne.s32.totalorder %s37, %s40
      %p46 = scmp.eq.s32.totalorder %s13, 0
      %p47 = por %p45, %p46
      %p48 = scmp.ne.s32.totalorder %s37, %s40
      %p49 = scmp.eq.s32.totalorder %s18, 1
      %p50 = por %p48, %p49
      %p51 = scmp.ne.s32.totalorder %s40, %s41
      %p52 = scmp.eq.s32.totalorder %s18, 0
      %p53 = por %p51, %p52
      %p54 = scmp.ne.s32.totalorder %s40, %s41
      %p55 = scmp.eq.s32.totalorder %s19, 1
      %p56 = por %p54, %p55
      %p58 = scmp.ne.s32.totalorder %s41, %s57
      %p59 = scmp.eq.s32.totalorder %s19, 0
      %p60 = por %p58, %p59
      %s62 = sadd.s32 %s61, 1
      %p65 = scmp.eq.s32.totalorder %s13, 1
      %p66 = scmp.ne.s32.totalorder %s61, %s63
      %p67 = scmp.eq.s32.totalorder %s13, 0
      %p68 = por %p66, %p67
      %p69 = scmp.ne.s32.totalorder %s61, %s63
      %p70 = scmp.eq.s32.totalorder %s18, 1
      %p71 = por %p69, %p70
      %p72 = scmp.ne.s32.totalorder %s63, %s64
      %p73 = scmp.eq.s32.totalorder %s18, 0
      %p74 = por %p72, %p73
      %p75 = scmp.ne.s32.totalorder %s63, %s64
      %p76 = scmp.eq.s32.totalorder %s19, 1
      %p77 = por %p75, %p76
      %p79 = scmp.ne.s32.totalorder %s64, %s78
      %p80 = scmp.eq.s32.totalorder %s19, 0
      %p81 = por %p79, %p80
      %s83 = sadd.s32 %s82, 1
      %p86 = scmp.eq.s32.totalorder %s13, 1
      %p87 = scmp.ne.s32.totalorder %s82, %s84
      %p88 = scmp.eq.s32.totalorder %s13, 0
      %p89 = por %p87, %p88
      %p90 = scmp.ne.s32.totalorder %s82, %s84
      %p91 = scmp.eq.s32.totalorder %s18, 1
      %p92 = por %p90, %p91
      %p93 = scmp.ne.s32.totalorder %s84, %s85
      %p94 = scmp.eq.s32.totalorder %s18, 0
      %p95 = por %p93, %p94
      %p96 = scmp.ne.s32.totalorder %s84, %s85
      %p97 = scmp.eq.s32.totalorder %s19, 1
      %p98 = por %p96, %p97
      %p100 = scmp.ne.s32.totalorder %s85, %s99
      %p101 = scmp.eq.s32.totalorder %s19, 0
      %p102 = por %p100, %p101
      %s103 = ssub.s32 %s20, %s32
      %s104 = ssub.s32 %s21, %s28
      %s105 = sor.u32 %s103, %s104
      %p106 = scmp.eq.s32.totalorder %s105, 0
      %s108 = sadd.s32 %s107, 1
      %s109 = scalar_select %p106, %s107, %s108
      %p112 = pneg %p106
      %p113 = scmp.eq.s32.totalorder %s13, 1
      %p114 = por %p112, %p113
      %p115 = scmp.ne.s32.totalorder %s107, %s110
      %p116 = scmp.eq.s32.totalorder %s13, 0
      %p117 = por %p115, %p116
      %p118 = scmp.ne.s32.totalorder %s107, %s110
      %p119 = scmp.eq.s32.totalorder %s18, 1
      %p120 = por %p118, %p119
      %p121 = scmp.ne.s32.totalorder %s110, %s111
      %p122 = scmp.eq.s32.totalorder %s18, 0
      %p123 = por %p121, %p122
      %p124 = scmp.ne.s32.totalorder %s110, %s111
      %p125 = scmp.eq.s32.totalorder %s19, 1
      %p126 = por %p124, %p125
      %p128 = scmp.ne.s32.totalorder %s111, %s127
      %p129 = scmp.eq.s32.totalorder %s19, 0
      %p130 = por %p128, %p129
      %p131 = scmp.le.s32.totalorder 1, %s13
      %p132 = scmp.lt.s32.totalorder %s13, 3
      %p133 = pnand %p131, %p132
      %p134 = pneg %p133
      // Predicated region
      $region9: #{_forward.2} parent=5 // pred_check
        _
      $region10: #{_forward.2} parent=5 // pred_check_branch
        %136 = sbr.rel (%p133) target = $region12
      $region11: #{_forward.2} parent=5 // pred_region
        %s137 = ssub.s32 %s13, 1
        // Predicated region
        $region13: #{_forward.2} parent=11 // pred_check
          %p138 = pneg %p74
        $region14: #{_forward.2} parent=11 // pred_check_branch
          %140 = sbr.rel (%p138) target = $region16
        $region15: #{_forward.2} parent=11 // pred_region
          %s142 = ssub.s32 64, 64
          %143 = vsyncadd [#allocation5], %s142
          %s145 = sshll.u32 [#allocation4], 4
          %s146 = int_to_ptr.vmem [resolvable:$true] %s145
          %148 = dma.hbm_to_vmem [thread:$0]  %s1, 64, %s146, [#allocation5]
        $region16: #{_forward.2} parent=11 // pred_fallthru
          _
        // Predicated region
        $region17: #{_forward.2} parent=11 // pred_check
          %p149 = pneg %p95
        $region18: #{_forward.2} parent=11 // pred_check_branch
          %151 = sbr.rel (%p149) target = $region20
        $region19: #{_forward.2} parent=11 // pred_region
          _
        $region20: #{_forward.2} parent=11 // pred_fallthru
          _
      $region12: #{_forward.2} parent=5 // pred_fallthru
        _
      %p152 = scmp.lt.s32.totalorder %s13, 2
      // Predicated region
      $region21: #{_forward.2} parent=5 // pred_check
        %p153 = pneg %p152
      $region22: #{_forward.2} parent=5 // pred_check_branch
        %155 = sbr.rel (%p153) target = $region24
      $region23: #{_forward.2} parent=5 // pred_region
        // Predicated region
        $region25: #{_forward.2} parent=23 // pred_check
          %p156 = pneg %p47
        $region26: #{_forward.2} parent=23 // pred_check_branch
          %158 = sbr.rel (%p156) target = $region28
        $region27: #{_forward.2} parent=23 // pred_region
          %s159 = sand.u32 %s37, 1
          %s160 = scalar_lea.sflag [#allocation3], %s159
          %s161 = sand.u32 %s37, 1
          %s162 = smul.addr %s161, 16
          %s163 = scalar_lea.vmem [#allocation2], %s162
          %s164 = smul.u32 2, %s21
          %s166 = ssub.s32 256, 256
          %167 = vsyncadd %s160, %s166
          %s168 = smul.addr %s20, 2
          %s169 = sadd.s32 %s164, %s168
          %s170 = smul.addr %s169, 128
          %s171 = scalar_lea.hbm %s0, %s170
          %s172 = sshll.u32 %s163, 4
          %s173 = int_to_ptr.vmem [resolvable:$true] %s172
          %178 = dma.hbm_to_vmem [thread:$0]  %s171, 256, %s173, %s160, 128, 128, 8
        $region28: #{_forward.2} parent=23 // pred_fallthru
          _
      $region24: #{_forward.2} parent=5 // pred_fallthru
        _
      %p179 = scmp.le.s32.totalorder 1, %s13
      %p180 = scmp.lt.s32.totalorder %s13, 3
      %p181 = pnand %p179, %p180
      %p182 = pneg %p181
      // Predicated region
      $region29: #{_forward.2} parent=5 // pred_check
        _
      $region30: #{_forward.2} parent=5 // pred_check_branch
        %184 = sbr.rel (%p181) target = $region32
      $region31: #{_forward.2} parent=5 // pred_region
        %s185 = ssub.s32 %s13, 1
        %s186 = sand.u32 %s40, 1
        %s187 = scalar_lea.sflag [#allocation3], %s186
        %s188 = sand.u32 %s40, 1
        %s189 = smul.addr %s188, 16
        %s190 = scalar_lea.vmem [#allocation2], %s189
        // Predicated region
        $region33: #{_forward.2} parent=31 // pred_check
          %p191 = pneg %p53
        $region34: #{_forward.2} parent=31 // pred_check_branch
          %193 = sbr.rel (%p191) target = $region36
        $region35: #{_forward.2} parent=31 // pred_region
          %194 = dma.done %s187, 256
        $region36: #{_forward.2} parent=31 // pred_fallthru
          _
        // Predicated region
        $region37: #{_forward.2} parent=31 // pred_check
          %p195 = pneg %p74
        $region38: #{_forward.2} parent=31 // pred_check_branch
          %197 = sbr.rel (%p195) target = $region40
        $region39: #{_forward.2} parent=31 // pred_region
          %198 = dma.done [#allocation5], 64
        $region40: #{_forward.2} parent=31 // pred_fallthru
          _
        %s199 = sand.u32 %s40, 1
        %s200 = scalar_lea.sflag [#allocation3], %s199
        %s201 = sand.u32 %s40, 1
        %s202 = smul.addr %s201, 16
        %s203 = scalar_lea.vmem [#allocation2], %s202
        %p204 = pneg %p53
        %p205 = pneg %p50
        %p206 = pneg %p74
        %p207 = pneg %p71
        %p208 = pneg %p95
        %p209 = pneg %p92
        %p210 = pneg %p123
        %p211 = pneg %p120
        %p212 = scmp.lt.s32.totalorder %s22, 1
        %s213 = scalar_select %p212, %s22, 1
        %p214 = scmp.lt.s32.totalorder %s23, 0
        %s215 = scalar_select %p214, %s23, 0
        %s216 = sadd.s32 %s215, %s213
        %s217 = smul.addr %s216, 4
        %s218 = scalar_lea.vmem %s3, %s217
        %s219 = smul.u32 2, %s23
        %p220 = scmp.lt.s32.totalorder %s22, 1
        %s221 = scalar_select %p220, %s22, 1
        %p222 = scmp.lt.s32.totalorder %s23, 0
        %s223 = scalar_select %p222, %s23, 0
        %s224 = sadd.s32 %s223, %s221
        %s225 = smul.addr %s224, 4
        %s226 = scalar_lea.vmem %s3, %s225
        %v227 = vld [vmem:[#allocation4] sm:$0xf]
        %v228 = vld [vmem:[%s190] sm:$0xff]
        %v229 = vld [vmem:[%s190 + $0x8] sm:$0xff]
        %v230 = vld [vmem:[%s2] sm:$0xf]
        %232 = vset.pattern.permute.xlu0 0
        %233 = vperm.xlu0 %232, %v230
        %v234 = vpop.permute.xlu0 %233
        %vm236 = vcmask 261120
        %v238 = vsel %vm236, %v227, 0
        %v241 = vsel %vm236, %v228, 0
        %v244 = vsel %vm236, %v229, 0
        %246 = vmatprep.subr.mxu0 0.0
        %247 = vmatpush1.xpose.msra.mxu0 0.0
        %248 = vmatprep.subr.mxu0 0.0
        %249 = vmatpush1.xpose.msra.mxu0 0.0
        %250 = vmatprep.subr.mxu0 0.0
        %251 = vmatpush1.xpose.msra.mxu0 0.0
        %252 = vmatprep.subr.mxu0 0.0
        %253 = vmatpush1.xpose.msra.mxu0 0.0
        %254 = vmatprep.subr.mxu0 0.0
        %255 = vmatpush1.xpose.msra.mxu0 0.0
        %256 = vmatprep.subr.mxu0 0.0
        %257 = vmatpush1.xpose.msra.mxu0 0.0
        %258 = vmatprep.subr.mxu0 0.0
        %259 = vmatpush1.xpose.msra.mxu0 0.0
        %260 = vmatprep.subr.mxu0 0.0
        %261 = vmatpush1.xpose.msra.mxu0 0.0
        %262 = vmatprep.subr.mxu0 0.0
        %263 = vmatpush1.xpose.msra.mxu0 0.0
        %264 = vmatprep.subr.mxu0 0.0
        %265 = vmatpush1.xpose.msra.mxu0 0.0
        %266 = vmatprep.subr.mxu0 0.0
        %267 = vmatpush1.xpose.msra.mxu0 0.0
        %268 = vmatprep.subr.mxu0 0.0
        %269 = vmatpush1.xpose.msra.mxu0 0.0
        %270 = vmatprep.subr.mxu0 0.0
        %271 = vmatpush1.xpose.msra.mxu0 0.0
        %272 = vmatprep.subr.mxu0 0.0
        %273 = vmatpush1.xpose.msra.mxu0 0.0
        %274 = vmatprep.subr.mxu0 0.0
        %275 = vmatpush1.xpose.msra.mxu0 %v244
        %276 = vmatprep.subr.mxu0 0.0
        %277 = vmatpush1.xpose.msra.mxu0 %v241
        %278 = vmatprep.subr.mxu0 0.0
        %279 = vmatpush2.xpose.msra.mxu0 0.0
        %280 = vmatprep.subr.mxu0 0.0
        %281 = vmatpush2.xpose.msra.mxu0 0.0
        %282 = vmatprep.subr.mxu0 0.0
        %283 = vmatpush2.xpose.msra.mxu0 0.0
        %284 = vmatprep.subr.mxu0 0.0
        %285 = vmatpush2.xpose.msra.mxu0 0.0
        %286 = vmatprep.subr.mxu0 0.0
        %287 = vmatpush2.xpose.msra.mxu0 0.0
        %288 = vmatprep.subr.mxu0 0.0
        %289 = vmatpush2.xpose.msra.mxu0 0.0
        %290 = vmatprep.subr.mxu0 0.0
        %291 = vmatpush2.xpose.msra.mxu0 0.0
        %292 = vmatprep.subr.mxu0 0.0
        %293 = vmatpush2.xpose.msra.mxu0 0.0
        %294 = vmatprep.subr.mxu0 0.0
        %295 = vmatpush2.xpose.msra.mxu0 0.0
        %296 = vmatprep.subr.mxu0 0.0
        %297 = vmatpush2.xpose.msra.mxu0 0.0
        %298 = vmatprep.subr.mxu0 0.0
        %299 = vmatpush2.xpose.msra.mxu0 0.0
        %300 = vmatprep.subr.mxu0 0.0
        %301 = vmatpush2.xpose.msra.mxu0 0.0
        %302 = vmatprep.subr.mxu0 0.0
        %303 = vmatpush2.xpose.msra.mxu0 0.0
        %304 = vmatprep.subr.mxu0 0.0
        %305 = vmatpush2.xpose.msra.mxu0 0.0
        %306 = vmatprep.subr.mxu0 0.0
        %307 = vmatpush2.xpose.msra.mxu0 0.0
        %308 = vmatprep.subr.mxu0 0.0
        %309 = vmatpush2.xpose.msra.mxu0 0.0
        %310 = vmatprep.mubr.f32.mxu0 0.0
        %311 = vmatmul.mubr.f32.gmra.mxu0 %v238
        %v312 = vpop.f32.mrf.mxu0
        %v313 = vadd.f32 %v234, %v312
        %v314 = vpop.f32.mrf.mxu0
        %315 = vdwg.mxu0
        %vm316 = vcmask 125952
        %317 = vst.msk [vmem:[%s226] sm:$0xf] %vm316, %v313
        %p318 = scmp.lt.s32.totalorder %s22, 1
        %s319 = scalar_select %p318, %s22, 1
        %p320 = scmp.lt.s32.totalorder %s23, 0
        %s321 = scalar_select %p320, %s23, 0
        %s322 = sadd.s32 %s321, %s319
        %s323 = smul.addr %s322, 4
        %s324 = scalar_lea.vmem %s3, %s323
        // Predicated region
        $region41: #{_forward.2} parent=31 // pred_check
          %p325 = pneg %p120
        $region42: #{_forward.2} parent=31 // pred_check_branch
          %327 = sbr.rel (%p325) target = $region44
        $region43: #{_forward.2} parent=31 // pred_region
          _
        $region44: #{_forward.2} parent=31 // pred_fallthru
          _
      $region32: #{_forward.2} parent=5 // pred_fallthru
        _
      %p328 = scmp.le.s32.totalorder 2, %s13
      // Predicated region
      $region45: #{_forward.2} parent=5 // pred_check
        %p329 = pneg %p328
      $region46: #{_forward.2} parent=5 // pred_check_branch
        %331 = sbr.rel (%p329) target = $region48
      $region47: #{_forward.2} parent=5 // pred_region
        %s332 = ssub.s32 %s13, 2
        // Predicated region
        $region49: #{_forward.2} parent=47 // pred_check
          %p333 = pneg %p126
        $region50: #{_forward.2} parent=47 // pred_check_branch
          %335 = sbr.rel (%p333) target = $region52
        $region51: #{_forward.2} parent=47 // pred_region
          %p336 = scmp.lt.s32.totalorder %s24, 1
          %s337 = scalar_select %p336, %s24, 1
          %p338 = scmp.lt.s32.totalorder %s25, 0
          %s339 = scalar_select %p338, %s25, 0
          %s340 = sadd.s32 %s339, %s337
          %s341 = smul.addr %s340, 4
          %s342 = scalar_lea.vmem %s3, %s341
        $region52: #{_forward.2} parent=47 // pred_fallthru
          _
      $region48: #{_forward.2} parent=5 // pred_fallthru
        _
    $region6: #{_forward.2} parent=1 // loop_footer
      %s17 = sadd.s32 1, %s13
    $region7: #{_forward.2} parent=1 // loop_footer_branch
      %12 = sbr.rel target = $region3
    $region8: #{_forward.2} parent=1 // loop_exit
      _
    %343 = vsyncpa [#allocation3], 1
    %s344 = scalar_lea.sflag [#allocation3], 1
    %345 = vsyncpa %s344, 1
    %346 = vsyncpa [#allocation5], 1

// kernel: _forward.3
$region0: #{_forward.3}
  #allocation0 [shape = 'u32[]', space=smem, size = 0x4, offset = 0x4, fixed_abs, tag = 'smem constant byte address 0x4 - core index']
  #allocation1 [shape = 'u32[144,128]{1,0:T(1,128)}', space=vmem, size = 0x12000, scoped, tag = 'internal scratch']
  #allocation6 [shape = 's32[]', space=sflag, size = 0x4, offset = 0, fixed_abs, tag = 'sflag constant byte address 0x0 - dummy sync flag']
  %s0 = inlined_call_operand.vmem [shape: f32[2,16,4], index: 0, kind: input, shape index: {}]
  %s1 = inlined_call_operand.hbm [shape: f32[4,256], index: 1, kind: input, shape index: {}]
  %s2 = inlined_call_operand.vmem [shape: f32[256,4], index: 2, kind: input, shape index: {}]
  %s3 = inlined_call_operand.hbm [shape: f32[2,4,256,256], index: 3, kind: output, shape index: {}]
  %s4 = sld [smem:[#allocation0]]
  $region49: #{_forward.3} parent=0
    _
  %s6 = ssub.s32 1, %s4
  %s7 = scalar_select 0, %s6, %s4
  $region1: #{_forward.3} parent=0
    #allocation2 [shape = 'u8[4096]{0}', space=vmem, size = 0x1000, scoped, tag = 'input window, operand 1, single buffered']
    #allocation3 [shape = 's32[2]{0}', space=sflag, size = 0x8, scoped, tag = 'scoped memory for _forward.3']
    #allocation4 [shape = 's32[2]{0}', space=sflag, size = 0x8, scoped, tag = 'scoped memory for _forward.3']
    #allocation5 [shape = 'u8[1048576]{0}', space=vmem, size = 0x100000, scoped, tag = 'output window, operand 0']
    %8 = vsyncpa [#allocation3], 0
    %9 = vsyncpa [#allocation4], 0
    %s10 = scalar_lea.sflag [#allocation4], 1
    %11 = vsyncpa %s10, 0
    loop: start=0, step=1, limit=6
    $region2: #{_forward.3} parent=1 // loop_pre_header
      _
    $region3: #{_forward.3} parent=1 // loop_header
      %s13 = sphi 0, %s17
      %p14 = scmp.ge.s32.totalorder %s13, 6
      %s20 = sphi 0, %s39
      %s21 = sphi 0, %s35
      %s22 = sphi 0, %s31
      %s23 = sphi 0, %s20
      %s24 = sphi 0, %s21
      %s25 = sphi 0, %s22
      %s26 = sphi 0, %s23
      %s27 = sphi 0, %s24
      %s28 = sphi 0, %s25
      %s44 = sphi 0, %s46
      %s47 = sphi 0, %s44
      %s48 = sphi 0, %s47
      %s64 = sphi 0, %s48
      %s68 = sphi 0, %s68
      %s70 = sphi 0, %s68
      %s71 = sphi 0, %s70
      %s85 = sphi 0, %s71
      %s91 = sphi 0, %s93
      %s94 = sphi 0, %s91
      %s95 = sphi 0, %s94
      %s111 = sphi 0, %s95
      %s121 = sphi 0, %s123
      %s124 = sphi 0, %s121
      %s125 = sphi 0, %s124
      %s141 = sphi 0, %s125
    $region4: #{_forward.3} parent=1 // loop_header_branch
      %16 = sbr.rel (%p14) target = $region8
    $region5: #{_forward.3} parent=1 // loop_body
      %s18 = ssub.s32 %s13, 1
      %s19 = ssub.s32 %s13, 2
      %s29 = sadd.s32 1, %s22
      %p30 = scmp.ge.s32.totalorder %s29, 2
      %s31 = scalar_select %p30, 0, %s29
      %s32 = sadd.s32 1, %s21
      %s33 = scalar_select %p30, %s32, %s21
      %p34 = scmp.ge.s32.totalorder %s33, 1
      %s35 = scalar_select %p34, 0, %s33
      %s36 = sadd.s32 1, %s20
      %s37 = scalar_select %p34, %s36, %s20
      %p38 = scmp.ge.s32.totalorder %s37, 2
      %s39 = scalar_select %p38, 0, %s37
      %s40 = ssub.s32 %s20, %s39
      %s41 = ssub.s32 %s21, %s35
      %s42 = sor.u32 %s40, %s41
      %p43 = scmp.eq.s32.totalorder %s42, 0
      %s45 = sadd.s32 %s44, 1
      %s46 = scalar_select %p43, %s44, %s45
      %p49 = pneg %p43
      %p50 = scmp.eq.s32.totalorder %s13, 3
      %p51 = por %p49, %p50
      %p52 = scmp.ne.s32.totalorder %s44, %s47
      %p53 = scmp.eq.s32.totalorder %s13, 0
      %p54 = por %p52, %p53
      %p55 = scmp.ne.s32.totalorder %s44, %s47
      %p56 = scmp.eq.s32.totalorder %s18, 3
      %p57 = por %p55, %p56
      %p58 = scmp.ne.s32.totalorder %s47, %s48
      %p59 = scmp.eq.s32.totalorder %s18, 0
      %p60 = por %p58, %p59
      %p61 = scmp.ne.s32.totalorder %s47, %s48
      %p62 = scmp.eq.s32.totalorder %s19, 3
      %p63 = por %p61, %p62
      %p65 = scmp.ne.s32.totalorder %s48, %s64
      %p66 = scmp.eq.s32.totalorder %s19, 0
      %p67 = por %p65, %p66
      %s69 = sadd.s32 %s68, 1
      %p72 = scmp.eq.s32.totalorder %s13, 3
      %p73 = scmp.ne.s32.totalorder %s68, %s70
      %p74 = scmp.eq.s32.totalorder %s13, 0
      %p75 = por %p73, %p74
      %p76 = scmp.ne.s32.totalorder %s68, %s70
      %p77 = scmp.eq.s32.totalorder %s18, 3
      %p78 = por %p76, %p77
      %p79 = scmp.ne.s32.totalorder %s70, %s71
      %p80 = scmp.eq.s32.totalorder %s18, 0
      %p81 = por %p79, %p80
      %p82 = scmp.ne.s32.totalorder %s70, %s71
      %p83 = scmp.eq.s32.totalorder %s19, 3
      %p84 = por %p82, %p83
      %p86 = scmp.ne.s32.totalorder %s71, %s85
      %p87 = scmp.eq.s32.totalorder %s19, 0
      %p88 = por %p86, %p87
      %s89 = ssub.s32 %s22, %s31
      %p90 = scmp.eq.s32.totalorder %s89, 0
      %s92 = sadd.s32 %s91, 1
      %s93 = scalar_select %p90, %s91, %s92
      %p96 = pneg %p90
      %p97 = scmp.eq.s32.totalorder %s13, 3
      %p98 = por %p96, %p97
      %p99 = scmp.ne.s32.totalorder %s91, %s94
      %p100 = scmp.eq.s32.totalorder %s13, 0
      %p101 = por %p99, %p100
      %p102 = scmp.ne.s32.totalorder %s91, %s94
      %p103 = scmp.eq.s32.totalorder %s18, 3
      %p104 = por %p102, %p103
      %p105 = scmp.ne.s32.totalorder %s94, %s95
      %p106 = scmp.eq.s32.totalorder %s18, 0
      %p107 = por %p105, %p106
      %p108 = scmp.ne.s32.totalorder %s94, %s95
      %p109 = scmp.eq.s32.totalorder %s19, 3
      %p110 = por %p108, %p109
      %p112 = scmp.ne.s32.totalorder %s95, %s111
      %p113 = scmp.eq.s32.totalorder %s19, 0
      %p114 = por %p112, %p113
      %s115 = ssub.s32 %s20, %s39
      %s116 = ssub.s32 %s21, %s35
      %s117 = sor.u32 %s115, %s116
      %s118 = ssub.s32 %s22, %s31
      %s119 = sor.u32 %s117, %s118
      %p120 = scmp.eq.s32.totalorder %s119, 0
      %s122 = sadd.s32 %s121, 1
      %s123 = scalar_select %p120, %s121, %s122
      %p126 = pneg %p120
      %p127 = scmp.eq.s32.totalorder %s13, 3
      %p128 = por %p126, %p127
      %p129 = scmp.ne.s32.totalorder %s121, %s124
      %p130 = scmp.eq.s32.totalorder %s13, 0
      %p131 = por %p129, %p130
      %p132 = scmp.ne.s32.totalorder %s121, %s124
      %p133 = scmp.eq.s32.totalorder %s18, 3
      %p134 = por %p132, %p133
      %p135 = scmp.ne.s32.totalorder %s124, %s125
      %p136 = scmp.eq.s32.totalorder %s18, 0
      %p137 = por %p135, %p136
      %p138 = scmp.ne.s32.totalorder %s124, %s125
      %p139 = scmp.eq.s32.totalorder %s19, 3
      %p140 = por %p138, %p139
      %p142 = scmp.ne.s32.totalorder %s125, %s141
      %p143 = scmp.eq.s32.totalorder %s19, 0
      %p144 = por %p142, %p143
      %p145 = scmp.le.s32.totalorder 1, %s13
      %p146 = scmp.lt.s32.totalorder %s13, 5
      %p147 = pnand %p145, %p146
      %p148 = pneg %p147
      // Predicated region
      $region9: #{_forward.3} parent=5 // pred_check
        _
      $region10: #{_forward.3} parent=5 // pred_check_branch
        %150 = sbr.rel (%p147) target = $region12
      $region11: #{_forward.3} parent=5 // pred_region
        %s151 = ssub.s32 %s13, 1
        // Predicated region
        $region13: #{_forward.3} parent=11 // pred_check
          %p152 = pneg %p81
        $region14: #{_forward.3} parent=11 // pred_check_branch
          %154 = sbr.rel (%p152) target = $region16
        $region15: #{_forward.3} parent=11 // pred_region
          %s156 = ssub.s32 128, 128
          %157 = vsyncadd [#allocation3], %s156
          %s159 = sshll.u32 [#allocation2], 4
          %s160 = int_to_ptr.vmem [resolvable:$true] %s159
          %162 = dma.hbm_to_vmem [thread:$0]  %s1, 128, %s160, [#allocation3]
        $region16: #{_forward.3} parent=11 // pred_fallthru
          _
      $region12: #{_forward.3} parent=5 // pred_fallthru
        _
      %p163 = scmp.lt.s32.totalorder %s13, 4
      // Predicated region
      $region17: #{_forward.3} parent=5 // pred_check
        %p164 = pneg %p163
      $region18: #{_forward.3} parent=5 // pred_check_branch
        %166 = sbr.rel (%p164) target = $region20
      $region19: #{_forward.3} parent=5 // pred_region
        // Predicated region
        $region21: #{_forward.3} parent=19 // pred_check
          %p167 = pneg %p54
        $region22: #{_forward.3} parent=19 // pred_check_branch
          %169 = sbr.rel (%p167) target = $region24
        $region23: #{_forward.3} parent=19 // pred_region
          %s170 = smul.u32 2, %s21
          %p171 = scmp.lt.s32.totalorder %s20, 1
          %s172 = scalar_select %p171, %s20, 1
          %p173 = scmp.lt.s32.totalorder %s170, 1
          %s174 = scalar_select %p173, %s170, 1
          %s175 = smul.addr %s172, 2
          %s176 = sadd.s32 %s174, %s175
          %s177 = smul.addr %s176, 8
          %s178 = scalar_lea.vmem %s0, %s177
          %s179 = smul.u32 2, %s21
        $region24: #{_forward.3} parent=19 // pred_fallthru
          _
        // Predicated region
        $region25: #{_forward.3} parent=19 // pred_check
          %p180 = pneg %p101
        $region26: #{_forward.3} parent=19 // pred_check_branch
          %182 = sbr.rel (%p180) target = $region28
        $region27: #{_forward.3} parent=19 // pred_region
          %s183 = smul.u32 16, %s22
          %p184 = scmp.lt.s32.totalorder %s183, 31
          %s185 = scalar_select %p184, %s183, 31
          %s186 = smul.addr %s185, 8
          %s187 = scalar_lea.vmem %s2, %s186
          %s188 = smul.u32 16, %s22
        $region28: #{_forward.3} parent=19 // pred_fallthru
          _
      $region20: #{_forward.3} parent=5 // pred_fallthru
        _
      %p189 = scmp.le.s32.totalorder 1, %s13
      %p190 = scmp.lt.s32.totalorder %s13, 5
      %p191 = pnand %p189, %p190
      %p192 = pneg %p191
      // Predicated region
      $region29: #{_forward.3} parent=5 // pred_check
        _
      $region30: #{_forward.3} parent=5 // pred_check_branch
        %194 = sbr.rel (%p191) target = $region32
      $region31: #{_forward.3} parent=5 // pred_region
        %s195 = ssub.s32 %s13, 1
        // Predicated region
        $region33: #{_forward.3} parent=31 // pred_check
          %p196 = pneg %p81
        $region34: #{_forward.3} parent=31 // pred_check_branch
          %198 = sbr.rel (%p196) target = $region36
        $region35: #{_forward.3} parent=31 // pred_region
          %199 = dma.done [#allocation3], 128
        $region36: #{_forward.3} parent=31 // pred_fallthru
          _
        %s200 = smul.u32 2, %s24
        %p201 = scmp.lt.s32.totalorder %s23, 1
        %s202 = scalar_select %p201, %s23, 1
        %p203 = scmp.lt.s32.totalorder %s200, 1
        %s204 = scalar_select %p203, %s200, 1
        %s205 = smul.addr %s202, 2
        %s206 = sadd.s32 %s204, %s205
        %s207 = smul.addr %s206, 8
        %s208 = scalar_lea.vmem %s0, %s207
        %p209 = pneg %p60
        %p210 = pneg %p57
        %p211 = pneg %p81
        %p212 = pneg %p78
        %s213 = smul.u32 16, %s25
        %p214 = scmp.lt.s32.totalorder %s213, 31
        %s215 = scalar_select %p214, %s213, 31
        %s216 = smul.addr %s215, 8
        %s217 = scalar_lea.vmem %s2, %s216
        %p218 = pneg %p107
        %p219 = pneg %p104
        %p220 = pneg %p137
        %p221 = pneg %p134
        %s222 = sand.u32 %s124, 1
        %s223 = scalar_lea.sflag [#allocation4], %s222
        %s224 = sand.u32 %s124, 1
        %s225 = smul.addr %s224, 1024
        %s226 = scalar_lea.vmem [#allocation5], %s225
        %s227 = smul.u32 2, %s24
        %p228 = scmp.lt.s32.totalorder %s23, 1
        %s229 = scalar_select %p228, %s23, 1
        %p230 = scmp.lt.s32.totalorder %s227, 1
        %s231 = scalar_select %p230, %s227, 1
        %s232 = smul.addr %s229, 2
        %s233 = sadd.s32 %s231, %s232
        %s234 = smul.addr %s233, 8
        %s235 = scalar_lea.vmem %s0, %s234
        %s236 = smul.u32 2, %s24
        %s237 = smul.u32 16, %s25
        %p238 = scmp.lt.s32.totalorder %s237, 31
        %s239 = scalar_select %p238, %s237, 31
        %s240 = smul.addr %s239, 8
        %s241 = scalar_lea.vmem %s2, %s240
        %s242 = smul.u32 16, %s25
        %s243 = smul.u32 4, %s24
        %s244 = smul.u32 16, %s25
        %v245 = vld [vmem:[%s235] sm:$0xff]
        %v246 = vld [vmem:[%s235 + $0x8] sm:$0xff]
        %v247 = vld [vmem:[#allocation2] sm:$0xff]
        %v249 = vcombine.high %v247, %v247
        %vm250 = vcmask 31744
        %v252 = vsel %vm250, %v245, 0
        %v255 = vsel %vm250, %v246, 0
        %vm257 = vcmask 1043456
        %v258 = vsel %vm257, %v247, 0
        %v260 = vsel %vm257, %v249, 0
        %262 = vmatprep.subr.mxu0 0.0
        %263 = vmatpush1.msra.mxu0 0.0
        %264 = vmatprep.subr.mxu0 0.0
        %265 = vmatpush1.msra.mxu0 0.0
        %266 = vmatprep.subr.mxu0 0.0
        %267 = vmatpush1.msra.mxu0 0.0
        %268 = vmatprep.subr.mxu0 0.0
        %269 = vmatpush1.msra.mxu0 0.0
        %270 = vmatprep.subr.mxu0 0.0
        %271 = vmatpush1.msra.mxu0 0.0
        %272 = vmatprep.subr.mxu0 0.0
        %273 = vmatpush1.msra.mxu0 0.0
        %274 = vmatprep.subr.mxu0 0.0
        %275 = vmatpush1.msra.mxu0 0.0
        %276 = vmatprep.subr.mxu0 0.0
        %277 = vmatpush1.msra.mxu0 0.0
        %278 = vmatprep.subr.mxu0 0.0
        %279 = vmatpush1.msra.mxu0 0.0
        %280 = vmatprep.subr.mxu0 0.0
        %281 = vmatpush1.msra.mxu0 0.0
        %282 = vmatprep.subr.mxu0 0.0
        %283 = vmatpush1.msra.mxu0 0.0
        %284 = vmatprep.subr.mxu0 0.0
        %285 = vmatpush1.msra.mxu0 0.0
        %286 = vmatprep.subr.mxu0 0.0
        %287 = vmatpush1.msra.mxu0 0.0
        %288 = vmatprep.subr.mxu0 0.0
        %289 = vmatpush1.msra.mxu0 0.0
        %290 = vmatprep.subr.mxu0 0.0
        %291 = vmatpush1.msra.mxu0 0.0
        %292 = vmatprep.subr.mxu0 %v260
        %293 = vmatpush1.msra.mxu0 %v258
        %294 = vmatprep.subr.mxu0 0.0
        %295 = vmatpush2.msra.mxu0 0.0
        %296 = vmatprep.subr.mxu0 0.0
        %297 = vmatpush2.msra.mxu0 0.0
        %298 = vmatprep.subr.mxu0 0.0
        %299 = vmatpush2.msra.mxu0 0.0
        %300 = vmatprep.subr.mxu0 0.0
        %301 = vmatpush2.msra.mxu0 0.0
        %302 = vmatprep.subr.mxu0 0.0
        %303 = vmatpush2.msra.mxu0 0.0
        %304 = vmatprep.subr.mxu0 0.0
        %305 = vmatpush2.msra.mxu0 0.0
        %306 = vmatprep.subr.mxu0 0.0
        %307 = vmatpush2.msra.mxu0 0.0
        %308 = vmatprep.subr.mxu0 0.0
        %309 = vmatpush2.msra.mxu0 0.0
        %310 = vmatprep.subr.mxu0 0.0
        %311 = vmatpush2.msra.mxu0 0.0
        %312 = vmatprep.subr.mxu0 0.0
        %313 = vmatpush2.msra.mxu0 0.0
        %314 = vmatprep.subr.mxu0 0.0
        %315 = vmatpush2.msra.mxu0 0.0
        %316 = vmatprep.subr.mxu0 0.0
        %317 = vmatpush2.msra.mxu0 0.0
        %318 = vmatprep.subr.mxu0 0.0
        %319 = vmatpush2.msra.mxu0 0.0
        %320 = vmatprep.subr.mxu0 0.0
        %321 = vmatpush2.msra.mxu0 0.0
        %322 = vmatprep.subr.mxu0 0.0
        %323 = vmatpush2.msra.mxu0 0.0
        %324 = vmatprep.subr.mxu0 0.0
        %325 = vmatpush2.msra.mxu0 0.0
        %326 = vmatprep.mubr.f32.mxu0 0.0
        %327 = vmatmul.mubr.f32.gmra.mxu0 %v252
        %v328 = vpop.f32.mrf.mxu0
        %v329 = vadd.f32 0.0, %v328
        %v330 = vpop.f32.mrf.mxu0
        %v331 = vadd.f32 0.0, %v330
        %332 = vmatprep.mubr.f32.mxu0 0.0
        %333 = vmatmul.mubr.f32.gmra.mxu0 %v255
        %v334 = vpop.f32.mrf.mxu0
        %v335 = vadd.f32 0.0, %v334
        %v336 = vpop.f32.mrf.mxu0
        %v337 = vadd.f32 0.0, %v336
        %338 = vdwg.mxu0
        %v339 = vld [vmem:[%s241] sm:$0xff]
        %v340 = vld [vmem:[%s241 + $0x8] sm:$0xff]
        %v341 = vld [vmem:[%s241 + $0x10] sm:$0xff]
        %v342 = vld [vmem:[%s241 + $0x18] sm:$0xff]
        %v343 = vld [vmem:[%s241 + $0x20] sm:$0xff]
        %v344 = vld [vmem:[%s241 + $0x28] sm:$0xff]
        %v345 = vld [vmem:[%s241 + $0x30] sm:$0xff]
        %v346 = vld [vmem:[%s241 + $0x38] sm:$0xff]
        %v347 = vld [vmem:[%s241 + $0x40] sm:$0xff]
        %v348 = vld [vmem:[%s241 + $0x48] sm:$0xff]
        %v349 = vld [vmem:[%s241 + $0x50] sm:$0xff]
        %v350 = vld [vmem:[%s241 + $0x58] sm:$0xff]
        %v351 = vld [vmem:[%s241 + $0x60] sm:$0xff]
        %v352 = vld [vmem:[%s241 + $0x68] sm:$0xff]
        %v353 = vld [vmem:[%s241 + $0x70] sm:$0xff]
        %v354 = vld [vmem:[%s241 + $0x78] sm:$0xff]
        %v356 = vsel %vm250, %v339, 0
        %v359 = vsel %vm250, %v340, 0
        %v362 = vsel %vm250, %v341, 0
        %v365 = vsel %vm250, %v342, 0
        %v368 = vsel %vm250, %v343, 0
        %v371 = vsel %vm250, %v344, 0
        %v374 = vsel %vm250, %v345, 0
        %v377 = vsel %vm250, %v346, 0
        %v380 = vsel %vm250, %v347, 0
        %v383 = vsel %vm250, %v348, 0
        %v386 = vsel %vm250, %v349, 0
        %v389 = vsel %vm250, %v350, 0
        %v392 = vsel %vm250, %v351, 0
        %v395 = vsel %vm250, %v352, 0
        %v398 = vsel %vm250, %v353, 0
        %v401 = vsel %vm250, %v354, 0
        %v404 = vsel %vm257, %v329, 0
        %v407 = vsel %vm257, %v331, 0
        %409 = vmatprep.subr.mxu0 0.0
        %410 = vmatpush1.msra.mxu0 0.0
        %411 = vmatprep.subr.mxu0 0.0
        %412 = vmatpush1.msra.mxu0 0.0
        %413 = vmatprep.subr.mxu0 0.0
        %414 = vmatpush1.msra.mxu0 0.0
        %415 = vmatprep.subr.mxu0 0.0
        %416 = vmatpush1.msra.mxu0 0.0
        %417 = vmatprep.subr.mxu0 0.0
        %418 = vmatpush1.msra.mxu0 0.0
        %419 = vmatprep.subr.mxu0 0.0
        %420 = vmatpush1.msra.mxu0 0.0
        %421 = vmatprep.subr.mxu0 0.0
        %422 = vmatpush1.msra.mxu0 0.0
        %423 = vmatprep.subr.mxu0 0.0
        %424 = vmatpush1.msra.mxu0 0.0
        %425 = vmatprep.subr.mxu0 0.0
        %426 = vmatpush1.msra.mxu0 0.0
        %427 = vmatprep.subr.mxu0 0.0
        %428 = vmatpush1.msra.mxu0 0.0
        %429 = vmatprep.subr.mxu0 0.0
        %430 = vmatpush1.msra.mxu0 0.0
        %431 = vmatprep.subr.mxu0 0.0
        %432 = vmatpush1.msra.mxu0 0.0
        %433 = vmatprep.subr.mxu0 0.0
        %434 = vmatpush1.msra.mxu0 0.0
        %435 = vmatprep.subr.mxu0 0.0
        %436 = vmatpush1.msra.mxu0 0.0
        %437 = vmatprep.subr.mxu0 0.0
        %438 = vmatpush1.msra.mxu0 0.0
        %439 = vmatprep.subr.mxu0 %v407
        %440 = vmatpush1.msra.mxu0 %v404
        %441 = vmatprep.subr.mxu0 0.0
        %442 = vmatpush2.msra.mxu0 0.0
        %443 = vmatprep.subr.mxu0 0.0
        %444 = vmatpush2.msra.mxu0 0.0
        %445 = vmatprep.subr.mxu0 0.0
        %446 = vmatpush2.msra.mxu0 0.0
        %447 = vmatprep.subr.mxu0 0.0
        %448 = vmatpush2.msra.mxu0 0.0
        %449 = vmatprep.subr.mxu0 0.0
        %450 = vmatpush2.msra.mxu0 0.0
        %451 = vmatprep.subr.mxu0 0.0
        %452 = vmatpush2.msra.mxu0 0.0
        %453 = vmatprep.subr.mxu0 0.0
        %454 = vmatpush2.msra.mxu0 0.0
        %455 = vmatprep.subr.mxu0 0.0
        %456 = vmatpush2.msra.mxu0 0.0
        %457 = vmatprep.subr.mxu0 0.0
        %458 = vmatpush2.msra.mxu0 0.0
        %459 = vmatprep.subr.mxu0 0.0
        %460 = vmatpush2.msra.mxu0 0.0
        %461 = vmatprep.subr.mxu0 0.0
        %462 = vmatpush2.msra.mxu0 0.0
        %463 = vmatprep.subr.mxu0 0.0
        %464 = vmatpush2.msra.mxu0 0.0
        %465 = vmatprep.subr.mxu0 0.0
        %466 = vmatpush2.msra.mxu0 0.0
        %467 = vmatprep.subr.mxu0 0.0
        %468 = vmatpush2.msra.mxu0 0.0
        %469 = vmatprep.subr.mxu0 0.0
        %470 = vmatpush2.msra.mxu0 0.0
        %471 = vmatprep.subr.mxu0 0.0
        %472 = vmatpush2.msra.mxu0 0.0
        %473 = vmatprep.mubr.f32.mxu0 0.0
        %474 = vmatmul.mubr.f32.gmra.mxu0 %v356
        %v475 = vpop.f32.mrf.mxu0
        %v476 = vadd.f32 0.0, %v475
        %v477 = vpop.f32.mrf.mxu0
        %v478 = vadd.f32 0.0, %v477
        %479 = vmatprep.mubr.f32.mxu0 0.0
        %480 = vmatmul.mubr.f32.gmra.mxu0 %v359
        %v481 = vpop.f32.mrf.mxu0
        %v482 = vadd.f32 0.0, %v481
        %v483 = vpop.f32.mrf.mxu0
        %v484 = vadd.f32 0.0, %v483
        %485 = vmatprep.mubr.f32.mxu0 0.0
        %486 = vmatmul.mubr.f32.gmra.mxu0 %v362
        %v487 = vpop.f32.mrf.mxu0
        %v488 = vadd.f32 0.0, %v487
        %v489 = vpop.f32.mrf.mxu0
        %v490 = vadd.f32 0.0, %v489
        %491 = vmatprep.mubr.f32.mxu0 0.0
        %492 = vmatmul.mubr.f32.gmra.mxu0 %v365
        %v493 = vpop.f32.mrf.mxu0
        %v494 = vadd.f32 0.0, %v493
        %v495 = vpop.f32.mrf.mxu0
        %v496 = vadd.f32 0.0, %v495
        %497 = vmatprep.mubr.f32.mxu0 0.0
        %498 = vmatmul.mubr.f32.gmra.mxu0 %v368
        %v499 = vpop.f32.mrf.mxu0
        %v500 = vadd.f32 0.0, %v499
        %v501 = vpop.f32.mrf.mxu0
        %v502 = vadd.f32 0.0, %v501
        %503 = vmatprep.mubr.f32.mxu0 0.0
        %504 = vmatmul.mubr.f32.gmra.mxu0 %v371
        %v505 = vpop.f32.mrf.mxu0
        %v506 = vadd.f32 0.0, %v505
        %v507 = vpop.f32.mrf.mxu0
        %v508 = vadd.f32 0.0, %v507
        %509 = vmatprep.mubr.f32.mxu0 0.0
        %510 = vmatmul.mubr.f32.gmra.mxu0 %v374
        %v511 = vpop.f32.mrf.mxu0
        %v512 = vadd.f32 0.0, %v511
        %v513 = vpop.f32.mrf.mxu0
        %v514 = vadd.f32 0.0, %v513
        %515 = vmatprep.mubr.f32.mxu0 0.0
        %516 = vmatmul.mubr.f32.gmra.mxu0 %v377
        %v517 = vpop.f32.mrf.mxu0
        %v518 = vadd.f32 0.0, %v517
        %v519 = vpop.f32.mrf.mxu0
        %v520 = vadd.f32 0.0, %v519
        %521 = vmatprep.mubr.f32.mxu0 0.0
        %522 = vmatmul.mubr.f32.gmra.mxu0 %v380
        %v523 = vpop.f32.mrf.mxu0
        %v524 = vadd.f32 0.0, %v523
        %v525 = vpop.f32.mrf.mxu0
        %v526 = vadd.f32 0.0, %v525
        %527 = vmatprep.mubr.f32.mxu0 0.0
        %528 = vmatmul.mubr.f32.gmra.mxu0 %v383
        %v529 = vpop.f32.mrf.mxu0
        %v530 = vadd.f32 0.0, %v529
        %v531 = vpop.f32.mrf.mxu0
        %v532 = vadd.f32 0.0, %v531
        %533 = vmatprep.mubr.f32.mxu0 0.0
        %534 = vmatmul.mubr.f32.gmra.mxu0 %v386
        %v535 = vpop.f32.mrf.mxu0
        %v536 = vadd.f32 0.0, %v535
        %v537 = vpop.f32.mrf.mxu0
        %v538 = vadd.f32 0.0, %v537
        %539 = vmatprep.mubr.f32.mxu0 0.0
        %540 = vmatmul.mubr.f32.gmra.mxu0 %v389
        %v541 = vpop.f32.mrf.mxu0
        %v542 = vadd.f32 0.0, %v541
        %v543 = vpop.f32.mrf.mxu0
        %v544 = vadd.f32 0.0, %v543
        %545 = vmatprep.mubr.f32.mxu0 0.0
        %546 = vmatmul.mubr.f32.gmra.mxu0 %v392
        %v547 = vpop.f32.mrf.mxu0
        %v548 = vadd.f32 0.0, %v547
        %v549 = vpop.f32.mrf.mxu0
        %v550 = vadd.f32 0.0, %v549
        %551 = vmatprep.mubr.f32.mxu0 0.0
        %552 = vmatmul.mubr.f32.gmra.mxu0 %v395
        %v553 = vpop.f32.mrf.mxu0
        %v554 = vadd.f32 0.0, %v553
        %v555 = vpop.f32.mrf.mxu0
        %v556 = vadd.f32 0.0, %v555
        %557 = vmatprep.mubr.f32.mxu0 0.0
        %558 = vmatmul.mubr.f32.gmra.mxu0 %v398
        %v559 = vpop.f32.mrf.mxu0
        %v560 = vadd.f32 0.0, %v559
        %v561 = vpop.f32.mrf.mxu0
        %v562 = vadd.f32 0.0, %v561
        %563 = vmatprep.mubr.f32.mxu0 0.0
        %564 = vmatmul.mubr.f32.gmra.mxu0 %v401
        %v565 = vpop.f32.mrf.mxu0
        %v566 = vadd.f32 0.0, %v565
        %v567 = vpop.f32.mrf.mxu0
        %v568 = vadd.f32 0.0, %v567
        %569 = vdwg.mxu0
        %570 = vst [vmem:[%s226] sm:$0xff] %v476
        %571 = vst [vmem:[%s226 + $0x8] sm:$0xff] %v478
        %572 = vst [vmem:[%s226 + $0x10] sm:$0xff] %v482
        %573 = vst [vmem:[%s226 + $0x18] sm:$0xff] %v484
        %574 = vst [vmem:[%s226 + $0x20] sm:$0xff] %v488
        %575 = vst [vmem:[%s226 + $0x28] sm:$0xff] %v490
        %576 = vst [vmem:[%s226 + $0x30] sm:$0xff] %v494
        %577 = vst [vmem:[%s226 + $0x38] sm:$0xff] %v496
        %578 = vst [vmem:[%s226 + $0x40] sm:$0xff] %v500
        %579 = vst [vmem:[%s226 + $0x48] sm:$0xff] %v502
        %580 = vst [vmem:[%s226 + $0x50] sm:$0xff] %v506
        %581 = vst [vmem:[%s226 + $0x58] sm:$0xff] %v508
        %582 = vst [vmem:[%s226 + $0x60] sm:$0xff] %v512
        %583 = vst [vmem:[%s226 + $0x68] sm:$0xff] %v514
        %584 = vst [vmem:[%s226 + $0x70] sm:$0xff] %v518
        %585 = vst [vmem:[%s226 + $0x78] sm:$0xff] %v520
        %586 = vst [vmem:[%s226 + $0x80] sm:$0xff] %v524
        %587 = vst [vmem:[%s226 + $0x88] sm:$0xff] %v526
        %588 = vst [vmem:[%s226 + $0x90] sm:$0xff] %v530
        %589 = vst [vmem:[%s226 + $0x98] sm:$0xff] %v532
        %590 = vst [vmem:[%s226 + $0xa0] sm:$0xff] %v536
        %591 = vst [vmem:[%s226 + $0xa8] sm:$0xff] %v538
        %592 = vst [vmem:[%s226 + $0xb0] sm:$0xff] %v542
        %593 = vst [vmem:[%s226 + $0xb8] sm:$0xff] %v544
        %594 = vst [vmem:[%s226 + $0xc0] sm:$0xff] %v548
        %595 = vst [vmem:[%s226 + $0xc8] sm:$0xff] %v550
        %596 = vst [vmem:[%s226 + $0xd0] sm:$0xff] %v554
        %597 = vst [vmem:[%s226 + $0xd8] sm:$0xff] %v556
        %598 = vst [vmem:[%s226 + $0xe0] sm:$0xff] %v560
        %599 = vst [vmem:[%s226 + $0xe8] sm:$0xff] %v562
        %600 = vst [vmem:[%s226 + $0xf0] sm:$0xff] %v566
        %601 = vst [vmem:[%s226 + $0xf8] sm:$0xff] %v568
        %v602 = vrot.slane %v329, 4
        %v603 = vrot.slane %v331, 4
        %v604 = vsel %vm257, %v602, 0
        %v606 = vsel %vm257, %v603, 0
        %608 = vmatprep.subr.mxu0 0.0
        %609 = vmatpush1.msra.mxu0 0.0
        %610 = vmatprep.subr.mxu0 0.0
        %611 = vmatpush1.msra.mxu0 0.0
        %612 = vmatprep.subr.mxu0 0.0
        %613 = vmatpush1.msra.mxu0 0.0
        %614 = vmatprep.subr.mxu0 0.0
        %615 = vmatpush1.msra.mxu0 0.0
        %616 = vmatprep.subr.mxu0 0.0
        %617 = vmatpush1.msra.mxu0 0.0
        %618 = vmatprep.subr.mxu0 0.0
        %619 = vmatpush1.msra.mxu0 0.0
        %620 = vmatprep.subr.mxu0 0.0
        %621 = vmatpush1.msra.mxu0 0.0
        %622 = vmatprep.subr.mxu0 0.0
        %623 = vmatpush1.msra.mxu0 0.0
        %624 = vmatprep.subr.mxu0 0.0
        %625 = vmatpush1.msra.mxu0 0.0
        %626 = vmatprep.subr.mxu0 0.0
        %627 = vmatpush1.msra.mxu0 0.0
        %628 = vmatprep.subr.mxu0 0.0
        %629 = vmatpush1.msra.mxu0 0.0
        %630 = vmatprep.subr.mxu0 0.0
        %631 = vmatpush1.msra.mxu0 0.0
        %632 = vmatprep.subr.mxu0 0.0
        %633 = vmatpush1.msra.mxu0 0.0
        %634 = vmatprep.subr.mxu0 0.0
        %635 = vmatpush1.msra.mxu0 0.0
        %636 = vmatprep.subr.mxu0 0.0
        %637 = vmatpush1.msra.mxu0 0.0
        %638 = vmatprep.subr.mxu0 %v606
        %639 = vmatpush1.msra.mxu0 %v604
        %640 = vmatprep.subr.mxu0 0.0
        %641 = vmatpush2.msra.mxu0 0.0
        %642 = vmatprep.subr.mxu0 0.0
        %643 = vmatpush2.msra.mxu0 0.0
        %644 = vmatprep.subr.mxu0 0.0
        %645 = vmatpush2.msra.mxu0 0.0
        %646 = vmatprep.subr.mxu0 0.0
        %647 = vmatpush2.msra.mxu0 0.0
        %648 = vmatprep.subr.mxu0 0.0
        %649 = vmatpush2.msra.mxu0 0.0
        %650 = vmatprep.subr.mxu0 0.0
        %651 = vmatpush2.msra.mxu0 0.0
        %652 = vmatprep.subr.mxu0 0.0
        %653 = vmatpush2.msra.mxu0 0.0
        %654 = vmatprep.subr.mxu0 0.0
        %655 = vmatpush2.msra.mxu0 0.0
        %656 = vmatprep.subr.mxu0 0.0
        %657 = vmatpush2.msra.mxu0 0.0
        %658 = vmatprep.subr.mxu0 0.0
        %659 = vmatpush2.msra.mxu0 0.0
        %660 = vmatprep.subr.mxu0 0.0
        %661 = vmatpush2.msra.mxu0 0.0
        %662 = vmatprep.subr.mxu0 0.0
        %663 = vmatpush2.msra.mxu0 0.0
        %664 = vmatprep.subr.mxu0 0.0
        %665 = vmatpush2.msra.mxu0 0.0
        %666 = vmatprep.subr.mxu0 0.0
        %667 = vmatpush2.msra.mxu0 0.0
        %668 = vmatprep.subr.mxu0 0.0
        %669 = vmatpush2.msra.mxu0 0.0
        %670 = vmatprep.subr.mxu0 0.0
        %671 = vmatpush2.msra.mxu0 0.0
        %672 = vmatprep.mubr.f32.mxu0 0.0
        %673 = vmatmul.mubr.f32.gmra.mxu0 %v356
        %v674 = vpop.f32.mrf.mxu0
        %v675 = vadd.f32 0.0, %v674
        %v676 = vpop.f32.mrf.mxu0
        %v677 = vadd.f32 0.0, %v676
        %678 = vmatprep.mubr.f32.mxu0 0.0
        %679 = vmatmul.mubr.f32.gmra.mxu0 %v359
        %v680 = vpop.f32.mrf.mxu0
        %v681 = vadd.f32 0.0, %v680
        %v682 = vpop.f32.mrf.mxu0
        %v683 = vadd.f32 0.0, %v682
        %684 = vmatprep.mubr.f32.mxu0 0.0
        %685 = vmatmul.mubr.f32.gmra.mxu0 %v362
        %v686 = vpop.f32.mrf.mxu0
        %v687 = vadd.f32 0.0, %v686
        %v688 = vpop.f32.mrf.mxu0
        %v689 = vadd.f32 0.0, %v688
        %690 = vmatprep.mubr.f32.mxu0 0.0
        %691 = vmatmul.mubr.f32.gmra.mxu0 %v365
        %v692 = vpop.f32.mrf.mxu0
        %v693 = vadd.f32 0.0, %v692
        %v694 = vpop.f32.mrf.mxu0
        %v695 = vadd.f32 0.0, %v694
        %696 = vmatprep.mubr.f32.mxu0 0.0
        %697 = vmatmul.mubr.f32.gmra.mxu0 %v368
        %v698 = vpop.f32.mrf.mxu0
        %v699 = vadd.f32 0.0, %v698
        %v700 = vpop.f32.mrf.mxu0
        %v701 = vadd.f32 0.0, %v700
        %702 = vmatprep.mubr.f32.mxu0 0.0
        %703 = vmatmul.mubr.f32.gmra.mxu0 %v371
        %v704 = vpop.f32.mrf.mxu0
        %v705 = vadd.f32 0.0, %v704
        %v706 = vpop.f32.mrf.mxu0
        %v707 = vadd.f32 0.0, %v706
        %708 = vmatprep.mubr.f32.mxu0 0.0
        %709 = vmatmul.mubr.f32.gmra.mxu0 %v374
        %v710 = vpop.f32.mrf.mxu0
        %v711 = vadd.f32 0.0, %v710
        %v712 = vpop.f32.mrf.mxu0
        %v713 = vadd.f32 0.0, %v712
        %714 = vmatprep.mubr.f32.mxu0 0.0
        %715 = vmatmul.mubr.f32.gmra.mxu0 %v377
        %v716 = vpop.f32.mrf.mxu0
        %v717 = vadd.f32 0.0, %v716
        %v718 = vpop.f32.mrf.mxu0
        %v719 = vadd.f32 0.0, %v718
        %720 = vmatprep.mubr.f32.mxu0 0.0
        %721 = vmatmul.mubr.f32.gmra.mxu0 %v380
        %v722 = vpop.f32.mrf.mxu0
        %v723 = vadd.f32 0.0, %v722
        %v724 = vpop.f32.mrf.mxu0
        %v725 = vadd.f32 0.0, %v724
        %726 = vmatprep.mubr.f32.mxu0 0.0
        %727 = vmatmul.mubr.f32.gmra.mxu0 %v383
        %v728 = vpop.f32.mrf.mxu0
        %v729 = vadd.f32 0.0, %v728
        %v730 = vpop.f32.mrf.mxu0
        %v731 = vadd.f32 0.0, %v730
        %732 = vmatprep.mubr.f32.mxu0 0.0
        %733 = vmatmul.mubr.f32.gmra.mxu0 %v386
        %v734 = vpop.f32.mrf.mxu0
        %v735 = vadd.f32 0.0, %v734
        %v736 = vpop.f32.mrf.mxu0
        %v737 = vadd.f32 0.0, %v736
        %738 = vmatprep.mubr.f32.mxu0 0.0
        %739 = vmatmul.mubr.f32.gmra.mxu0 %v389
        %v740 = vpop.f32.mrf.mxu0
        %v741 = vadd.f32 0.0, %v740
        %v742 = vpop.f32.mrf.mxu0
        %v743 = vadd.f32 0.0, %v742
        %744 = vmatprep.mubr.f32.mxu0 0.0
        %745 = vmatmul.mubr.f32.gmra.mxu0 %v392
        %v746 = vpop.f32.mrf.mxu0
        %v747 = vadd.f32 0.0, %v746
        %v748 = vpop.f32.mrf.mxu0
        %v749 = vadd.f32 0.0, %v748
        %750 = vmatprep.mubr.f32.mxu0 0.0
        %751 = vmatmul.mubr.f32.gmra.mxu0 %v395
        %v752 = vpop.f32.mrf.mxu0
        %v753 = vadd.f32 0.0, %v752
        %v754 = vpop.f32.mrf.mxu0
        %v755 = vadd.f32 0.0, %v754
        %756 = vmatprep.mubr.f32.mxu0 0.0
        %757 = vmatmul.mubr.f32.gmra.mxu0 %v398
        %v758 = vpop.f32.mrf.mxu0
        %v759 = vadd.f32 0.0, %v758
        %v760 = vpop.f32.mrf.mxu0
        %v761 = vadd.f32 0.0, %v760
        %762 = vmatprep.mubr.f32.mxu0 0.0
        %763 = vmatmul.mubr.f32.gmra.mxu0 %v401
        %v764 = vpop.f32.mrf.mxu0
        %v765 = vadd.f32 0.0, %v764
        %v766 = vpop.f32.mrf.mxu0
        %v767 = vadd.f32 0.0, %v766
        %768 = vdwg.mxu0
        %s769 = scalar_lea.vmem %s226, 256 [#allocation5]
        %770 = vst [vmem:[%s769] sm:$0xff] %v675
        %771 = vst [vmem:[%s769 + $0x8] sm:$0xff] %v677
        %772 = vst [vmem:[%s769 + $0x10] sm:$0xff] %v681
        %773 = vst [vmem:[%s769 + $0x18] sm:$0xff] %v683
        %774 = vst [vmem:[%s769 + $0x20] sm:$0xff] %v687
        %775 = vst [vmem:[%s769 + $0x28] sm:$0xff] %v689
        %776 = vst [vmem:[%s769 + $0x30] sm:$0xff] %v693
        %777 = vst [vmem:[%s769 + $0x38] sm:$0xff] %v695
        %778 = vst [vmem:[%s769 + $0x40] sm:$0xff] %v699
        %779 = vst [vmem:[%s769 + $0x48] sm:$0xff] %v701
        %780 = vst [vmem:[%s769 + $0x50] sm:$0xff] %v705
        %781 = vst [vmem:[%s769 + $0x58] sm:$0xff] %v707
        %782 = vst [vmem:[%s769 + $0x60] sm:$0xff] %v711
        %783 = vst [vmem:[%s769 + $0x68] sm:$0xff] %v713
        %784 = vst [vmem:[%s769 + $0x70] sm:$0xff] %v717
        %785 = vst [vmem:[%s769 + $0x78] sm:$0xff] %v719
        %786 = vst [vmem:[%s769 + $0x80] sm:$0xff] %v723
        %787 = vst [vmem:[%s769 + $0x88] sm:$0xff] %v725
        %788 = vst [vmem:[%s769 + $0x90] sm:$0xff] %v729
        %789 = vst [vmem:[%s769 + $0x98] sm:$0xff] %v731
        %790 = vst [vmem:[%s769 + $0xa0] sm:$0xff] %v735
        %791 = vst [vmem:[%s769 + $0xa8] sm:$0xff] %v737
        %792 = vst [vmem:[%s769 + $0xb0] sm:$0xff] %v741
        %793 = vst [vmem:[%s769 + $0xb8] sm:$0xff] %v743
        %794 = vst [vmem:[%s769 + $0xc0] sm:$0xff] %v747
        %795 = vst [vmem:[%s769 + $0xc8] sm:$0xff] %v749
        %796 = vst [vmem:[%s769 + $0xd0] sm:$0xff] %v753
        %797 = vst [vmem:[%s769 + $0xd8] sm:$0xff] %v755
        %798 = vst [vmem:[%s769 + $0xe0] sm:$0xff] %v759
        %799 = vst [vmem:[%s769 + $0xe8] sm:$0xff] %v761
        %800 = vst [vmem:[%s769 + $0xf0] sm:$0xff] %v765
        %801 = vst [vmem:[%s769 + $0xf8] sm:$0xff] %v767
        %v803 = vsel %vm257, %v335, 0
        %v806 = vsel %vm257, %v337, 0
        %808 = vmatprep.subr.mxu0 0.0
        %809 = vmatpush1.msra.mxu0 0.0
        %810 = vmatprep.subr.mxu0 0.0
        %811 = vmatpush1.msra.mxu0 0.0
        %812 = vmatprep.subr.mxu0 0.0
        %813 = vmatpush1.msra.mxu0 0.0
        %814 = vmatprep.subr.mxu0 0.0
        %815 = vmatpush1.msra.mxu0 0.0
        %816 = vmatprep.subr.mxu0 0.0
        %817 = vmatpush1.msra.mxu0 0.0
        %818 = vmatprep.subr.mxu0 0.0
        %819 = vmatpush1.msra.mxu0 0.0
        %820 = vmatprep.subr.mxu0 0.0
        %821 = vmatpush1.msra.mxu0 0.0
        %822 = vmatprep.subr.mxu0 0.0
        %823 = vmatpush1.msra.mxu0 0.0
        %824 = vmatprep.subr.mxu0 0.0
        %825 = vmatpush1.msra.mxu0 0.0
        %826 = vmatprep.subr.mxu0 0.0
        %827 = vmatpush1.msra.mxu0 0.0
        %828 = vmatprep.subr.mxu0 0.0
        %829 = vmatpush1.msra.mxu0 0.0
        %830 = vmatprep.subr.mxu0 0.0
        %831 = vmatpush1.msra.mxu0 0.0
        %832 = vmatprep.subr.mxu0 0.0
        %833 = vmatpush1.msra.mxu0 0.0
        %834 = vmatprep.subr.mxu0 0.0
        %835 = vmatpush1.msra.mxu0 0.0
        %836 = vmatprep.subr.mxu0 0.0
        %837 = vmatpush1.msra.mxu0 0.0
        %838 = vmatprep.subr.mxu0 %v806
        %839 = vmatpush1.msra.mxu0 %v803
        %840 = vmatprep.subr.mxu0 0.0
        %841 = vmatpush2.msra.mxu0 0.0
        %842 = vmatprep.subr.mxu0 0.0
        %843 = vmatpush2.msra.mxu0 0.0
        %844 = vmatprep.subr.mxu0 0.0
        %845 = vmatpush2.msra.mxu0 0.0
        %846 = vmatprep.subr.mxu0 0.0
        %847 = vmatpush2.msra.mxu0 0.0
        %848 = vmatprep.subr.mxu0 0.0
        %849 = vmatpush2.msra.mxu0 0.0
        %850 = vmatprep.subr.mxu0 0.0
        %851 = vmatpush2.msra.mxu0 0.0
        %852 = vmatprep.subr.mxu0 0.0
        %853 = vmatpush2.msra.mxu0 0.0
        %854 = vmatprep.subr.mxu0 0.0
        %855 = vmatpush2.msra.mxu0 0.0
        %856 = vmatprep.subr.mxu0 0.0
        %857 = vmatpush2.msra.mxu0 0.0
        %858 = vmatprep.subr.mxu0 0.0
        %859 = vmatpush2.msra.mxu0 0.0
        %860 = vmatprep.subr.mxu0 0.0
        %861 = vmatpush2.msra.mxu0 0.0
        %862 = vmatprep.subr.mxu0 0.0
        %863 = vmatpush2.msra.mxu0 0.0
        %864 = vmatprep.subr.mxu0 0.0
        %865 = vmatpush2.msra.mxu0 0.0
        %866 = vmatprep.subr.mxu0 0.0
        %867 = vmatpush2.msra.mxu0 0.0
        %868 = vmatprep.subr.mxu0 0.0
        %869 = vmatpush2.msra.mxu0 0.0
        %870 = vmatprep.subr.mxu0 0.0
        %871 = vmatpush2.msra.mxu0 0.0
        %872 = vmatprep.mubr.f32.mxu0 0.0
        %873 = vmatmul.mubr.f32.gmra.mxu0 %v356
        %v874 = vpop.f32.mrf.mxu0
        %v875 = vadd.f32 0.0, %v874
        %v876 = vpop.f32.mrf.mxu0
        %v877 = vadd.f32 0.0, %v876
        %878 = vmatprep.mubr.f32.mxu0 0.0
        %879 = vmatmul.mubr.f32.gmra.mxu0 %v359
        %v880 = vpop.f32.mrf.mxu0
        %v881 = vadd.f32 0.0, %v880
        %v882 = vpop.f32.mrf.mxu0
        %v883 = vadd.f32 0.0, %v882
        %884 = vmatprep.mubr.f32.mxu0 0.0
        %885 = vmatmul.mubr.f32.gmra.mxu0 %v362
        %v886 = vpop.f32.mrf.mxu0
        %v887 = vadd.f32 0.0, %v886
        %v888 = vpop.f32.mrf.mxu0
        %v889 = vadd.f32 0.0, %v888
        %890 = vmatprep.mubr.f32.mxu0 0.0
        %891 = vmatmul.mubr.f32.gmra.mxu0 %v365
        %v892 = vpop.f32.mrf.mxu0
        %v893 = vadd.f32 0.0, %v892
        %v894 = vpop.f32.mrf.mxu0
        %v895 = vadd.f32 0.0, %v894
        %896 = vmatprep.mubr.f32.mxu0 0.0
        %897 = vmatmul.mubr.f32.gmra.mxu0 %v368
        %v898 = vpop.f32.mrf.mxu0
        %v899 = vadd.f32 0.0, %v898
        %v900 = vpop.f32.mrf.mxu0
        %v901 = vadd.f32 0.0, %v900
        %902 = vmatprep.mubr.f32.mxu0 0.0
        %903 = vmatmul.mubr.f32.gmra.mxu0 %v371
        %v904 = vpop.f32.mrf.mxu0
        %v905 = vadd.f32 0.0, %v904
        %v906 = vpop.f32.mrf.mxu0
        %v907 = vadd.f32 0.0, %v906
        %908 = vmatprep.mubr.f32.mxu0 0.0
        %909 = vmatmul.mubr.f32.gmra.mxu0 %v374
        %v910 = vpop.f32.mrf.mxu0
        %v911 = vadd.f32 0.0, %v910
        %v912 = vpop.f32.mrf.mxu0
        %v913 = vadd.f32 0.0, %v912
        %914 = vmatprep.mubr.f32.mxu0 0.0
        %915 = vmatmul.mubr.f32.gmra.mxu0 %v377
        %v916 = vpop.f32.mrf.mxu0
        %v917 = vadd.f32 0.0, %v916
        %v918 = vpop.f32.mrf.mxu0
        %v919 = vadd.f32 0.0, %v918
        %920 = vmatprep.mubr.f32.mxu0 0.0
        %921 = vmatmul.mubr.f32.gmra.mxu0 %v380
        %v922 = vpop.f32.mrf.mxu0
        %v923 = vadd.f32 0.0, %v922
        %v924 = vpop.f32.mrf.mxu0
        %v925 = vadd.f32 0.0, %v924
        %926 = vmatprep.mubr.f32.mxu0 0.0
        %927 = vmatmul.mubr.f32.gmra.mxu0 %v383
        %v928 = vpop.f32.mrf.mxu0
        %v929 = vadd.f32 0.0, %v928
        %v930 = vpop.f32.mrf.mxu0
        %v931 = vadd.f32 0.0, %v930
        %932 = vmatprep.mubr.f32.mxu0 0.0
        %933 = vmatmul.mubr.f32.gmra.mxu0 %v386
        %v934 = vpop.f32.mrf.mxu0
        %v935 = vadd.f32 0.0, %v934
        %v936 = vpop.f32.mrf.mxu0
        %v937 = vadd.f32 0.0, %v936
        %938 = vmatprep.mubr.f32.mxu0 0.0
        %939 = vmatmul.mubr.f32.gmra.mxu0 %v389
        %v940 = vpop.f32.mrf.mxu0
        %v941 = vadd.f32 0.0, %v940
        %v942 = vpop.f32.mrf.mxu0
        %v943 = vadd.f32 0.0, %v942
        %944 = vmatprep.mubr.f32.mxu0 0.0
        %945 = vmatmul.mubr.f32.gmra.mxu0 %v392
        %v946 = vpop.f32.mrf.mxu0
        %v947 = vadd.f32 0.0, %v946
        %v948 = vpop.f32.mrf.mxu0
        %v949 = vadd.f32 0.0, %v948
        %950 = vmatprep.mubr.f32.mxu0 0.0
        %951 = vmatmul.mubr.f32.gmra.mxu0 %v395
        %v952 = vpop.f32.mrf.mxu0
        %v953 = vadd.f32 0.0, %v952
        %v954 = vpop.f32.mrf.mxu0
        %v955 = vadd.f32 0.0, %v954
        %956 = vmatprep.mubr.f32.mxu0 0.0
        %957 = vmatmul.mubr.f32.gmra.mxu0 %v398
        %v958 = vpop.f32.mrf.mxu0
        %v959 = vadd.f32 0.0, %v958
        %v960 = vpop.f32.mrf.mxu0
        %v961 = vadd.f32 0.0, %v960
        %962 = vmatprep.mubr.f32.mxu0 0.0
        %963 = vmatmul.mubr.f32.gmra.mxu0 %v401
        %v964 = vpop.f32.mrf.mxu0
        %v965 = vadd.f32 0.0, %v964
        %v966 = vpop.f32.mrf.mxu0
        %v967 = vadd.f32 0.0, %v966
        %968 = vdwg.mxu0
        %s969 = scalar_lea.vmem %s226, 512 [#allocation5]
        %970 = vst [vmem:[%s969] sm:$0xff] %v875
        %971 = vst [vmem:[%s969 + $0x8] sm:$0xff] %v877
        %972 = vst [vmem:[%s969 + $0x10] sm:$0xff] %v881
        %973 = vst [vmem:[%s969 + $0x18] sm:$0xff] %v883
        %974 = vst [vmem:[%s969 + $0x20] sm:$0xff] %v887
        %975 = vst [vmem:[%s969 + $0x28] sm:$0xff] %v889
        %976 = vst [vmem:[%s969 + $0x30] sm:$0xff] %v893
        %977 = vst [vmem:[%s969 + $0x38] sm:$0xff] %v895
        %978 = vst [vmem:[%s969 + $0x40] sm:$0xff] %v899
        %979 = vst [vmem:[%s969 + $0x48] sm:$0xff] %v901
        %980 = vst [vmem:[%s969 + $0x50] sm:$0xff] %v905
        %981 = vst [vmem:[%s969 + $0x58] sm:$0xff] %v907
        %982 = vst [vmem:[%s969 + $0x60] sm:$0xff] %v911
        %983 = vst [vmem:[%s969 + $0x68] sm:$0xff] %v913
        %984 = vst [vmem:[%s969 + $0x70] sm:$0xff] %v917
        %985 = vst [vmem:[%s969 + $0x78] sm:$0xff] %v919
        %986 = vst [vmem:[%s969 + $0x80] sm:$0xff] %v923
        %987 = vst [vmem:[%s969 + $0x88] sm:$0xff] %v925
        %988 = vst [vmem:[%s969 + $0x90] sm:$0xff] %v929
        %989 = vst [vmem:[%s969 + $0x98] sm:$0xff] %v931
        %990 = vst [vmem:[%s969 + $0xa0] sm:$0xff] %v935
        %991 = vst [vmem:[%s969 + $0xa8] sm:$0xff] %v937
        %992 = vst [vmem:[%s969 + $0xb0] sm:$0xff] %v941
        %993 = vst [vmem:[%s969 + $0xb8] sm:$0xff] %v943
        %994 = vst [vmem:[%s969 + $0xc0] sm:$0xff] %v947
        %995 = vst [vmem:[%s969 + $0xc8] sm:$0xff] %v949
        %996 = vst [vmem:[%s969 + $0xd0] sm:$0xff] %v953
        %997 = vst [vmem:[%s969 + $0xd8] sm:$0xff] %v955
        %998 = vst [vmem:[%s969 + $0xe0] sm:$0xff] %v959
        %999 = vst [vmem:[%s969 + $0xe8] sm:$0xff] %v961
        %1000 = vst [vmem:[%s969 + $0xf0] sm:$0xff] %v965
        %1001 = vst [vmem:[%s969 + $0xf8] sm:$0xff] %v967
        %v1002 = vrot.slane %v335, 4
        %v1003 = vrot.slane %v337, 4
        %v1004 = vsel %vm257, %v1002, 0
        %v1006 = vsel %vm257, %v1003, 0
        %1008 = vmatprep.subr.mxu0 0.0
        %1009 = vmatpush1.msra.mxu0 0.0
        %1010 = vmatprep.subr.mxu0 0.0
        %1011 = vmatpush1.msra.mxu0 0.0
        %1012 = vmatprep.subr.mxu0 0.0
        %1013 = vmatpush1.msra.mxu0 0.0
        %1014 = vmatprep.subr.mxu0 0.0
        %1015 = vmatpush1.msra.mxu0 0.0
        %1016 = vmatprep.subr.mxu0 0.0
        %1017 = vmatpush1.msra.mxu0 0.0
        %1018 = vmatprep.subr.mxu0 0.0
        %1019 = vmatpush1.msra.mxu0 0.0
        %1020 = vmatprep.subr.mxu0 0.0
        %1021 = vmatpush1.msra.mxu0 0.0
        %1022 = vmatprep.subr.mxu0 0.0
        %1023 = vmatpush1.msra.mxu0 0.0
        %1024 = vmatprep.subr.mxu0 0.0
        %1025 = vmatpush1.msra.mxu0 0.0
        %1026 = vmatprep.subr.mxu0 0.0
        %1027 = vmatpush1.msra.mxu0 0.0
        %1028 = vmatprep.subr.mxu0 0.0
        %1029 = vmatpush1.msra.mxu0 0.0
        %1030 = vmatprep.subr.mxu0 0.0
        %1031 = vmatpush1.msra.mxu0 0.0
        %1032 = vmatprep.subr.mxu0 0.0
        %1033 = vmatpush1.msra.mxu0 0.0
        %1034 = vmatprep.subr.mxu0 0.0
        %1035 = vmatpush1.msra.mxu0 0.0
        %1036 = vmatprep.subr.mxu0 0.0
        %1037 = vmatpush1.msra.mxu0 0.0
        %1038 = vmatprep.subr.mxu0 %v1006
        %1039 = vmatpush1.msra.mxu0 %v1004
        %1040 = vmatprep.subr.mxu0 0.0
        %1041 = vmatpush2.msra.mxu0 0.0
        %1042 = vmatprep.subr.mxu0 0.0
        %1043 = vmatpush2.msra.mxu0 0.0
        %1044 = vmatprep.subr.mxu0 0.0
        %1045 = vmatpush2.msra.mxu0 0.0
        %1046 = vmatprep.subr.mxu0 0.0
        %1047 = vmatpush2.msra.mxu0 0.0
        %1048 = vmatprep.subr.mxu0 0.0
        %1049 = vmatpush2.msra.mxu0 0.0
        %1050 = vmatprep.subr.mxu0 0.0
        %1051 = vmatpush2.msra.mxu0 0.0
        %1052 = vmatprep.subr.mxu0 0.0
        %1053 = vmatpush2.msra.mxu0 0.0
        %1054 = vmatprep.subr.mxu0 0.0
        %1055 = vmatpush2.msra.mxu0 0.0
        %1056 = vmatprep.subr.mxu0 0.0
        %1057 = vmatpush2.msra.mxu0 0.0
        %1058 = vmatprep.subr.mxu0 0.0
        %1059 = vmatpush2.msra.mxu0 0.0
        %1060 = vmatprep.subr.mxu0 0.0
        %1061 = vmatpush2.msra.mxu0 0.0
        %1062 = vmatprep.subr.mxu0 0.0
        %1063 = vmatpush2.msra.mxu0 0.0
        %1064 = vmatprep.subr.mxu0 0.0
        %1065 = vmatpush2.msra.mxu0 0.0
        %1066 = vmatprep.subr.mxu0 0.0
        %1067 = vmatpush2.msra.mxu0 0.0
        %1068 = vmatprep.subr.mxu0 0.0
        %1069 = vmatpush2.msra.mxu0 0.0
        %1070 = vmatprep.subr.mxu0 0.0
        %1071 = vmatpush2.msra.mxu0 0.0
        %1072 = vmatprep.mubr.f32.mxu0 0.0
        %1073 = vmatmul.mubr.f32.gmra.mxu0 %v356
        %v1074 = vpop.f32.mrf.mxu0
        %v1075 = vadd.f32 0.0, %v1074
        %v1076 = vpop.f32.mrf.mxu0
        %v1077 = vadd.f32 0.0, %v1076
        %1078 = vmatprep.mubr.f32.mxu0 0.0
        %1079 = vmatmul.mubr.f32.gmra.mxu0 %v359
        %v1080 = vpop.f32.mrf.mxu0
        %v1081 = vadd.f32 0.0, %v1080
        %v1082 = vpop.f32.mrf.mxu0
        %v1083 = vadd.f32 0.0, %v1082
        %1084 = vmatprep.mubr.f32.mxu0 0.0
        %1085 = vmatmul.mubr.f32.gmra.mxu0 %v362
        %v1086 = vpop.f32.mrf.mxu0
        %v1087 = vadd.f32 0.0, %v1086
        %v1088 = vpop.f32.mrf.mxu0
        %v1089 = vadd.f32 0.0, %v1088
        %1090 = vmatprep.mubr.f32.mxu0 0.0
        %1091 = vmatmul.mubr.f32.gmra.mxu0 %v365
        %v1092 = vpop.f32.mrf.mxu0
        %v1093 = vadd.f32 0.0, %v1092
        %v1094 = vpop.f32.mrf.mxu0
        %v1095 = vadd.f32 0.0, %v1094
        %1096 = vmatprep.mubr.f32.mxu0 0.0
        %1097 = vmatmul.mubr.f32.gmra.mxu0 %v368
        %v1098 = vpop.f32.mrf.mxu0
        %v1099 = vadd.f32 0.0, %v1098
        %v1100 = vpop.f32.mrf.mxu0
        %v1101 = vadd.f32 0.0, %v1100
        %1102 = vmatprep.mubr.f32.mxu0 0.0
        %1103 = vmatmul.mubr.f32.gmra.mxu0 %v371
        %v1104 = vpop.f32.mrf.mxu0
        %v1105 = vadd.f32 0.0, %v1104
        %v1106 = vpop.f32.mrf.mxu0
        %v1107 = vadd.f32 0.0, %v1106
        %1108 = vmatprep.mubr.f32.mxu0 0.0
        %1109 = vmatmul.mubr.f32.gmra.mxu0 %v374
        %v1110 = vpop.f32.mrf.mxu0
        %v1111 = vadd.f32 0.0, %v1110
        %v1112 = vpop.f32.mrf.mxu0
        %v1113 = vadd.f32 0.0, %v1112
        %1114 = vmatprep.mubr.f32.mxu0 0.0
        %1115 = vmatmul.mubr.f32.gmra.mxu0 %v377
        %v1116 = vpop.f32.mrf.mxu0
        %v1117 = vadd.f32 0.0, %v1116
        %v1118 = vpop.f32.mrf.mxu0
        %v1119 = vadd.f32 0.0, %v1118
        %1120 = vmatprep.mubr.f32.mxu0 0.0
        %1121 = vmatmul.mubr.f32.gmra.mxu0 %v380
        %v1122 = vpop.f32.mrf.mxu0
        %v1123 = vadd.f32 0.0, %v1122
        %v1124 = vpop.f32.mrf.mxu0
        %v1125 = vadd.f32 0.0, %v1124
        %1126 = vmatprep.mubr.f32.mxu0 0.0
        %1127 = vmatmul.mubr.f32.gmra.mxu0 %v383
        %v1128 = vpop.f32.mrf.mxu0
        %v1129 = vadd.f32 0.0, %v1128
        %v1130 = vpop.f32.mrf.mxu0
        %v1131 = vadd.f32 0.0, %v1130
        %1132 = vmatprep.mubr.f32.mxu0 0.0
        %1133 = vmatmul.mubr.f32.gmra.mxu0 %v386
        %v1134 = vpop.f32.mrf.mxu0
        %v1135 = vadd.f32 0.0, %v1134
        %v1136 = vpop.f32.mrf.mxu0
        %v1137 = vadd.f32 0.0, %v1136
        %1138 = vmatprep.mubr.f32.mxu0 0.0
        %1139 = vmatmul.mubr.f32.gmra.mxu0 %v389
        %v1140 = vpop.f32.mrf.mxu0
        %v1141 = vadd.f32 0.0, %v1140
        %v1142 = vpop.f32.mrf.mxu0
        %v1143 = vadd.f32 0.0, %v1142
        %1144 = vmatprep.mubr.f32.mxu0 0.0
        %1145 = vmatmul.mubr.f32.gmra.mxu0 %v392
        %v1146 = vpop.f32.mrf.mxu0
        %v1147 = vadd.f32 0.0, %v1146
        %v1148 = vpop.f32.mrf.mxu0
        %v1149 = vadd.f32 0.0, %v1148
        %1150 = vmatprep.mubr.f32.mxu0 0.0
        %1151 = vmatmul.mubr.f32.gmra.mxu0 %v395
        %v1152 = vpop.f32.mrf.mxu0
        %v1153 = vadd.f32 0.0, %v1152
        %v1154 = vpop.f32.mrf.mxu0
        %v1155 = vadd.f32 0.0, %v1154
        %1156 = vmatprep.mubr.f32.mxu0 0.0
        %1157 = vmatmul.mubr.f32.gmra.mxu0 %v398
        %v1158 = vpop.f32.mrf.mxu0
        %v1159 = vadd.f32 0.0, %v1158
        %v1160 = vpop.f32.mrf.mxu0
        %v1161 = vadd.f32 0.0, %v1160
        %1162 = vmatprep.mubr.f32.mxu0 0.0
        %1163 = vmatmul.mubr.f32.gmra.mxu0 %v401
        %v1164 = vpop.f32.mrf.mxu0
        %v1165 = vadd.f32 0.0, %v1164
        %v1166 = vpop.f32.mrf.mxu0
        %v1167 = vadd.f32 0.0, %v1166
        %1168 = vdwg.mxu0
        %s1169 = scalar_lea.vmem %s226, 768 [#allocation5]
        %1170 = vst [vmem:[%s1169] sm:$0xff] %v1075
        %1171 = vst [vmem:[%s1169 + $0x8] sm:$0xff] %v1077
        %1172 = vst [vmem:[%s1169 + $0x10] sm:$0xff] %v1081
        %1173 = vst [vmem:[%s1169 + $0x18] sm:$0xff] %v1083
        %1174 = vst [vmem:[%s1169 + $0x20] sm:$0xff] %v1087
        %1175 = vst [vmem:[%s1169 + $0x28] sm:$0xff] %v1089
        %1176 = vst [vmem:[%s1169 + $0x30] sm:$0xff] %v1093
        %1177 = vst [vmem:[%s1169 + $0x38] sm:$0xff] %v1095
        %1178 = vst [vmem:[%s1169 + $0x40] sm:$0xff] %v1099
        %1179 = vst [vmem:[%s1169 + $0x48] sm:$0xff] %v1101
        %1180 = vst [vmem:[%s1169 + $0x50] sm:$0xff] %v1105
        %1181 = vst [vmem:[%s1169 + $0x58] sm:$0xff] %v1107
        %1182 = vst [vmem:[%s1169 + $0x60] sm:$0xff] %v1111
        %1183 = vst [vmem:[%s1169 + $0x68] sm:$0xff] %v1113
        %1184 = vst [vmem:[%s1169 + $0x70] sm:$0xff] %v1117
        %1185 = vst [vmem:[%s1169 + $0x78] sm:$0xff] %v1119
        %1186 = vst [vmem:[%s1169 + $0x80] sm:$0xff] %v1123
        %1187 = vst [vmem:[%s1169 + $0x88] sm:$0xff] %v1125
        %1188 = vst [vmem:[%s1169 + $0x90] sm:$0xff] %v1129
        %1189 = vst [vmem:[%s1169 + $0x98] sm:$0xff] %v1131
        %1190 = vst [vmem:[%s1169 + $0xa0] sm:$0xff] %v1135
        %1191 = vst [vmem:[%s1169 + $0xa8] sm:$0xff] %v1137
        %1192 = vst [vmem:[%s1169 + $0xb0] sm:$0xff] %v1141
        %1193 = vst [vmem:[%s1169 + $0xb8] sm:$0xff] %v1143
        %1194 = vst [vmem:[%s1169 + $0xc0] sm:$0xff] %v1147
        %1195 = vst [vmem:[%s1169 + $0xc8] sm:$0xff] %v1149
        %1196 = vst [vmem:[%s1169 + $0xd0] sm:$0xff] %v1153
        %1197 = vst [vmem:[%s1169 + $0xd8] sm:$0xff] %v1155
        %1198 = vst [vmem:[%s1169 + $0xe0] sm:$0xff] %v1159
        %1199 = vst [vmem:[%s1169 + $0xe8] sm:$0xff] %v1161
        %1200 = vst [vmem:[%s1169 + $0xf0] sm:$0xff] %v1165
        %1201 = vst [vmem:[%s1169 + $0xf8] sm:$0xff] %v1167
        %s1202 = sand.u32 %s124, 1
        %s1203 = scalar_lea.sflag [#allocation4], %s1202
        %s1204 = sand.u32 %s124, 1
        %s1205 = smul.addr %s1204, 1024
        %s1206 = scalar_lea.vmem [#allocation5], %s1205
        // Predicated region
        $region37: #{_forward.3} parent=31 // pred_check
          %p1207 = pneg %p134
        $region38: #{_forward.3} parent=31 // pred_check_branch
          %1209 = sbr.rel (%p1207) target = $region40
        $region39: #{_forward.3} parent=31 // pred_region
          #allocation7 [shape = 'u32[6]{0}', space=smem, size = 0x18, scoped, tag = 'DMA stride descriptor']
          %s1210 = smul.u32 4, %s24
          %s1211 = smul.u32 16, %s25
          %s1213 = ssub.s32 16384, 16384
          %1214 = vsyncadd %s1203, %s1213
          %s1215 = smul.addr %s1211, 2
          %s1216 = smul.addr %s1210, 64
          %s1217 = sadd.s32 %s1215, %s1216
          %s1218 = smul.addr %s23, 256
          %s1219 = sadd.s32 %s1217, %s1218
          %s1220 = smul.addr %s1219, 128
          %s1221 = scalar_lea.hbm %s3, %s1220
          %s1223 = sshll.u32 1, 14
          %s1224 = sxor.u32 4294967295, %s1223
          %s1227 = sshll.u32 7, 18
          %s1228 = sxor.u32 4294967295, %s1227
          %s1229 = sand.u32 0, %s1228
          %s1231 = sor.u32 %s1229, 0
          %s1232 = sshll.u32 %s1206, 4
          %s1233 = int_to_ptr.vmem [resolvable:$true] %s1232
          %1239 = sst [smem:[#allocation7]] 4096
          %s1240 = scalar_lea.smem [#allocation7], 1
          %1241 = sst [smem:[%s1240]] 8192
          %s1242 = scalar_lea.smem [#allocation7], 2
          %1243 = sst [smem:[%s1242]] 16
          %s1244 = scalar_lea.smem [#allocation7], 3
          %1245 = sst [smem:[%s1244]] 256
          %s1246 = scalar_lea.smem [#allocation7], 4
          %1247 = sst [smem:[%s1246]] 256
          %s1248 = scalar_lea.smem [#allocation7], 5
          %1249 = sst [smem:[%s1248]] 16
          %1251 = dma.general %s1233, 16384, %s1221, %s1203, 131072, [#allocation7], %s1231, 0
        $region40: #{_forward.3} parent=31 // pred_fallthru
          _
      $region32: #{_forward.3} parent=5 // pred_fallthru
        _
      %p1252 = scmp.le.s32.totalorder 2, %s13
      // Predicated region
      $region41: #{_forward.3} parent=5 // pred_check
        %p1253 = pneg %p1252
      $region42: #{_forward.3} parent=5 // pred_check_branch
        %1255 = sbr.rel (%p1253) target = $region44
      $region43: #{_forward.3} parent=5 // pred_region
        %s1256 = ssub.s32 %s13, 2
        // Predicated region
        $region45: #{_forward.3} parent=43 // pred_check
          %p1257 = pneg %p140
        $region46: #{_forward.3} parent=43 // pred_check_branch
          %1259 = sbr.rel (%p1257) target = $region48
        $region47: #{_forward.3} parent=43 // pred_region
          %s1260 = sand.u32 %s125, 1
          %s1261 = scalar_lea.sflag [#allocation4], %s1260
          %s1262 = sand.u32 %s125, 1
          %s1263 = smul.addr %s1262, 1024
          %s1264 = scalar_lea.vmem [#allocation5], %s1263
          %1265 = dma.done %s1261, 16384
        $region48: #{_forward.3} parent=43 // pred_fallthru
          _
      $region44: #{_forward.3} parent=5 // pred_fallthru
        _
    $region6: #{_forward.3} parent=1 // loop_footer
      %s17 = sadd.s32 1, %s13
    $region7: #{_forward.3} parent=1 // loop_footer_branch
      %12 = sbr.rel target = $region3
    $region8: #{_forward.3} parent=1 // loop_exit
      _
    %1266 = vsyncpa [#allocation3], 1
    %s1267 = scalar_lea.sflag [#allocation3], 1
    %1268 = vsyncpa %s1267, 1
    %1269 = vsyncpa [#allocation4], 1
    %s1270 = scalar_lea.sflag [#allocation4], 1
    %1271 = vsyncpa %s1270, 1

</llo_original>
